<compile_context>
chip_gen: v7x
topology: tpu7x:2x2x1
jax: 0.10.0
libtpu: 0.0.40
codegen_flags: <defaults>
</compile_context>

<pallas_src>
import jax
import jax.numpy as jnp
from jax.experimental import pallas as pl
from jax.experimental.pallas import tpu as pltpu

INPUT_SIZE = 64
HIDDEN_SIZE = 32
NUM_CLASSES = 2
DROPOUT_RATE = 0.25   # eval mode -> identity
PAD_B = 8             # sublane-pad the batch dimension
PAD_C = 128           # lane-pad all MLP widths / final logits

D = INPUT_SIZE
H = HIDDEN_SIZE
G = 4 * H             # gate width = 128

# ---- packed weight-slab row offsets (all 8-aligned) -------------------------
R_WIH_F = 0                       # (D,  G)   i/f/o cols pre-scaled by 0.5
R_WHH_F = R_WIH_F + D             # (H,  G)   i/f/o cols pre-scaled by 0.5
R_B_F   = R_WHH_F + H             # row 0 of an 8-row block: (1, G), pre-scaled
R_WIH_B = R_B_F + PAD_B           # (D,  G)   pre-scaled
R_B_B   = R_WIH_B + D             # (8,  G)   pre-broadcast, pre-scaled
R_W1    = R_B_B + PAD_B           # (2H, 128)
R_B1    = R_W1 + 2 * H            # (8, 128)  pre-broadcast
R_W2    = R_B1 + PAD_B            # (128, 128)
R_B2    = R_W2 + PAD_C            # (8, 128)
R_W3    = R_B2 + PAD_B            # (128, 128) output cols 32:128 zero
R_B3    = R_W3 + PAD_C            # (8, 128)   cols 32:128 zero (ReLU keeps them 0)
R_W4    = R_B3 + PAD_B            # (128, 128) rows 32: and cols 2: zero
R_B4    = R_W4 + PAD_C            # (8, 128)   cols 2:128 = -1e30
N_ROWS  = R_B4 + PAD_B            # 656 rows total (~336 KiB resident)


# ----------------------------------------------------------------------------
# Fused kernel: BiLSTM (last timestep) -> fc1..fc4 -> softmax
# ----------------------------------------------------------------------------
def bilstm_fused_kernel(x_ref, w_ref, out_ref):
    # x_ref: (T*Bp, D) time-major, batch sublane-padded. w_ref: (656, 128) slab.
    TB, Din = x_ref.shape
    Bp = PAD_B
    T = TB // Bp

    # ---- forward direction --------------------------------------------------
    wih_f = w_ref[R_WIH_F:R_WIH_F + Din, :]           # (64, 128)
    whh_f = w_ref[R_WHH_F:R_WHH_F + H, :]             # (32, 128)
    b_f   = w_ref[R_B_F:R_B_F + 1, :]                 # (1, 128)

    # Hoisted input projection: one (T*Bp, D) x (D, 4H) MXU matmul, kept in vregs.
    xproj = jnp.dot(x_ref[...], wih_f, preferred_element_type=jnp.float32) + b_f

    h = jnp.zeros((Bp, H), jnp.float32)
    c = jnp.zeros((Bp, H), jnp.float32)
    for t in range(T):                                 # T static -> fully unrolled
        gates = xproj[t * Bp:(t + 1) * Bp, :] + jnp.dot(
            h, whh_f, preferred_element_type=jnp.float32)
        # i/f/o weight columns are pre-scaled by 0.5, so ONE tanh pass yields both
        # tanh(g) and sigmoid(i/f/o) = 0.5*tanh(x/2) + 0.5 (cheap VALU fixup).
        th = jnp.tanh(gates)
        i = 0.5 * th[:, 0 * H:1 * H] + 0.5
        f = 0.5 * th[:, 1 * H:2 * H] + 0.5
        g = th[:, 2 * H:3 * H]
        o = 0.5 * th[:, 3 * H:4 * H] + 0.5
        c = f * c + i * g
        h = o * jnp.tanh(c)                            # second (and last) EUP pass

    # ---- backward direction -------------------------------------------------
    # out[:, -1, H:] of a bidirectional LSTM is the reverse cell after a single
    # step on x[:, -1, :] from zero state, so h0 @ W_hh^b == 0 and f * c0 == 0.
    # NOTE: valid ONLY because the model consumes out[:, -1, :]; do not reuse for
    # full-sequence outputs.
    wih_b = w_ref[R_WIH_B:R_WIH_B + Din, :]            # (64, 128)
    b_b   = w_ref[R_B_B:R_B_B + Bp, :]                 # (8, 128) pre-broadcast
    x_last = x_ref[(T - 1) * Bp:T * Bp, :]             # (8, 64)
    gates_b = jnp.dot(x_last, wih_b, preferred_element_type=jnp.float32) + b_b
    th_b = jnp.tanh(gates_b)
    i_b = 0.5 * th_b[:, 0 * H:1 * H] + 0.5
    g_b = th_b[:, 2 * H:3 * H]
    o_b = 0.5 * th_b[:, 3 * H:4 * H] + 0.5
    h_bwd = o_b * jnp.tanh(i_b * g_b)

    # ---- MLP head + softmax -------------------------------------------------
    # TODO(synk): nn.Dropout(0.25) is identity in eval mode; training-mode RNG mask not emitted.
    y = jnp.concatenate([h, h_bwd], axis=1)            # (Bp, 2H)
    w1 = w_ref[R_W1:R_W1 + 2 * H, :]
    b1 = w_ref[R_B1:R_B1 + Bp, :]
    w2 = w_ref[R_W2:R_W2 + PAD_C, :]
    b2 = w_ref[R_B2:R_B2 + Bp, :]
    w3 = w_ref[R_W3:R_W3 + PAD_C, :]
    b3 = w_ref[R_B3:R_B3 + Bp, :]
    w4 = w_ref[R_W4:R_W4 + PAD_C, :]
    b4 = w_ref[R_B4:R_B4 + Bp, :]

    y = jnp.maximum(jnp.dot(y, w1, preferred_element_type=jnp.float32) + b1, 0.0)
    y = jnp.maximum(jnp.dot(y, w2, preferred_element_type=jnp.float32) + b2, 0.0)
    y = jnp.maximum(jnp.dot(y, w3, preferred_element_type=jnp.float32) + b3, 0.0)
    logits = jnp.dot(y, w4, preferred_element_type=jnp.float32) + b4
    # Padded logit lanes carry a -1e30 bias (f32) -> exp underflows to exactly 0,
    # so they never perturb the softmax over the real classes.
    z = logits - jnp.max(logits, axis=1, keepdims=True)
    e = jnp.exp(z)
    s = jnp.sum(e, axis=1, keepdims=True)
    out_ref[...] = e / s                               # exact divide: rows sum to 1


# ----------------------------------------------------------------------------
# Params, one-time packing, and wrapper
# ----------------------------------------------------------------------------
def init_params(key, input_size=INPUT_SIZE, hidden=HIDDEN_SIZE, num_classes=NUM_CLASSES):
    ks = jax.random.split(key, 12)
    s = 0.1

    def w(k, shape):
        return (s * jax.random.normal(k, shape)).astype(jnp.float32)

    params = {
        # LSTM weights stored already transposed: (in, 4H), PyTorch gate order i,f,g,o.
        "wih_f": w(ks[0], (input_size, 4 * hidden)),
        "whh_f": w(ks[1], (hidden, 4 * hidden)),
        "b_f":   w(ks[2], (1, 4 * hidden)),            # = b_ih + b_hh combined
        "wih_b": w(ks[3], (input_size, 4 * hidden)),
        "whh_b": w(ks[4], (hidden, 4 * hidden)),       # reference only; dead in kernel
        "b_b":   w(ks[5], (1, 4 * hidden)),
        "w1": w(ks[6], (2 * hidden, 128)), "b1": w(ks[7], (1, 128)),
        "w2": w(ks[8], (128, 128)),        "b2": w(ks[9], (1, 128)),
        "w3": w(ks[10], (128, 32)),        "b3": jnp.zeros((1, 32), jnp.float32),
        "w4": w(ks[11], (32, num_classes)), "b4": jnp.zeros((1, num_classes), jnp.float32),
    }
    return params


def pack_params(params):
    """One-time packing: fold the sigmoid-via-tanh 0.5 scale into i/f/o columns,
    lane-pad fc3/fc4 to 128, pre-broadcast biases, and stack everything into a
    single (656, 128) f32 slab consumed by the kernel as one DMA."""
    f32 = jnp.float32
    # 0.5 on the i/f/o gate columns, 1.0 on the g columns.
    scale = jnp.concatenate([
        jnp.full((H,), 0.5, f32), jnp.full((H,), 0.5, f32),
        jnp.ones((H,), f32), jnp.full((H,), 0.5, f32)])

    def brow(b):  # (1, 128) -> (8, 128) pre-broadcast block
        return jnp.tile(jnp.asarray(b, f32).reshape(1, -1), (PAD_B, 1))

    wih_f = params["wih_f"].astype(f32) * scale[None, :]
    whh_f = params["whh_f"].astype(f32) * scale[None, :]
    b_f   = params["b_f"].astype(f32) * scale[None, :]
    wih_b = params["wih_b"].astype(f32) * scale[None, :]
    b_b   = params["b_b"].astype(f32) * scale[None, :]

    b_f_blk = jnp.zeros((PAD_B, G), f32).at[0:1, :].set(b_f)

    w3p = jnp.zeros((PAD_C, PAD_C), f32).at[:, :32].set(params["w3"].astype(f32))
    b3p = jnp.zeros((1, PAD_C), f32).at[:, :32].set(params["b3"].astype(f32))
    w4p = jnp.zeros((PAD_C, PAD_C), f32).at[:32, :NUM_CLASSES].set(params["w4"].astype(f32))
    b4p = jnp.full((1, PAD_C), -1e30, f32).at[:, :NUM_CLASSES].set(params["b4"].astype(f32))

    slab = jnp.concatenate([
        wih_f,                        # rows   0: 64
        whh_f,                        # rows  64: 96
        b_f_blk,                      # rows  96:104
        wih_b,                        # rows 104:168
        brow(b_b),                    # rows 168:176
        params["w1"].astype(f32),     # rows 176:240
        brow(params["b1"]),           # rows 240:248
        params["w2"].astype(f32),     # rows 248:376
        brow(params["b2"]),           # rows 376:384
        w3p,                          # rows 384:512
        brow(b3p),                    # rows 512:520
        w4p,                          # rows 520:648
        brow(b4p),                    # rows 648:656
    ], axis=0)
    assert slab.shape == (N_ROWS, PAD_C)
    return slab


@jax.jit
def bilstm_forward(x, slab):
    # x: (B, T, D) float32 (batch_first, like PyTorch). slab: (656, 128) packed weights.
    B, T, Din = x.shape
    # Only per-call prep: pad batch to a full sublane tile and go time-major, so
    # x_flat[t*PAD_B:(t+1)*PAD_B] == x[:, t, :] (batch-padded).
    x_p = jnp.zeros((PAD_B, T, Din), jnp.float32).at[:B].set(x)
    x_flat = jnp.transpose(x_p, (1, 0, 2)).reshape(T * PAD_B, Din)

    vmem = pl.BlockSpec(memory_space=pltpu.MemorySpace.VMEM)
    probs_padded = pl.pallas_call(
        bilstm_fused_kernel,
        out_shape=jax.ShapeDtypeStruct((PAD_B, PAD_C), jnp.float32),
        in_specs=[vmem, vmem],
        out_specs=vmem,
    )(x_flat, slab)
    return probs_padded[:B, :NUM_CLASSES]


# Pure-JAX reference (exact sigmoid/tanh, exact divide, unscaled weights).
def bilstm_forward_ref(x, params):
    B, T, Din = x.shape

    def cell(xt, h, c, wih, whh, b):
        g = xt @ wih + h @ whh + b
        i = jax.nn.sigmoid(g[:, 0 * H:1 * H])
        f = jax.nn.sigmoid(g[:, 1 * H:2 * H])
        gg = jnp.tanh(g[:, 2 * H:3 * H])
        o = jax.nn.sigmoid(g[:, 3 * H:4 * H])
        c = f * c + i * gg
        h = o * jnp.tanh(c)
        return h, c

    h = jnp.zeros((B, H)); c = jnp.zeros((B, H))
    for t in range(T):
        h, c = cell(x[:, t, :], h, c, params["wih_f"], params["whh_f"], params["b_f"])
    hb, _ = cell(x[:, T - 1, :], jnp.zeros((B, H)), jnp.zeros((B, H)),
                 params["wih_b"], params["whh_b"], params["b_b"])
    out = jnp.concatenate([h, hb], axis=1)
    out = jnp.maximum(out @ params["w1"] + params["b1"], 0.0)
    out = jnp.maximum(out @ params["w2"] + params["b2"], 0.0)
    out = jnp.maximum(out @ params["w3"] + params["b3"], 0.0)
    logits = out @ params["w4"] + params["b4"]
    return jax.nn.softmax(logits, axis=1)


if __name__ == "__main__":
    key = jax.random.PRNGKey(0)
    kx, kp = jax.random.split(key)
    B, T = 2, 8
    x = jax.random.normal(kx, (B, T, INPUT_SIZE), dtype=jnp.float32)
    params = init_params(kp)
    slab = jax.block_until_ready(pack_params(params))   # one-time pre-packing

    out = bilstm_forward(x, slab)
    out = jax.block_until_ready(out)

    ref = bilstm_forward_ref(x, params)
    assert out.shape == (B, NUM_CLASSES)
    assert jnp.allclose(out, ref, atol=1e-3, rtol=1e-3), (out, ref)
    assert jnp.allclose(jnp.sum(out, axis=1), 1.0, atol=1e-4)

    print("KERNEL_OK")
</pallas_src>

<mosaic_0001>
module attributes {stable_mosaic.version = 11 : i64} {
  func.func @bilstm_fused_kernel(%arg0: memref<64x64xf32, #tpu.memory_space<vmem>>, %arg1: memref<656x128xf32, #tpu.memory_space<vmem>>, %arg2: memref<8x128xf32, #tpu.memory_space<vmem>>) attributes {dimension_semantics = [], scalar_prefetch = 0 : i64, scratch_operands = 0 : i64, tpu.core_type = #tpu.core_type<tc>} {
    %c0 = arith.constant 0 : index
    %c0_0 = arith.constant 0 : index
    %0 = vector.load %arg1[%c0, %c0_0] : memref<656x128xf32, #tpu.memory_space<vmem>>, vector<64x128xf32>
    %c64 = arith.constant 64 : index
    %c0_1 = arith.constant 0 : index
    %1 = vector.load %arg1[%c64, %c0_1] : memref<656x128xf32, #tpu.memory_space<vmem>>, vector<32x128xf32>
    %c96 = arith.constant 96 : index
    %c0_2 = arith.constant 0 : index
    %2 = vector.load %arg1[%c96, %c0_2] : memref<656x128xf32, #tpu.memory_space<vmem>>, vector<1x128xf32>
    %c0_3 = arith.constant 0 : index
    %c0_4 = arith.constant 0 : index
    %3 = vector.load %arg0[%c0_3, %c0_4] : memref<64x64xf32, #tpu.memory_space<vmem>>, vector<64x64xf32>
    %cst = arith.constant dense<0.000000e+00> : vector<64x128xf32>
    %4 = tpu.matmul %3, %0, %cst {dimension_numbers = #tpu.dot_dimension_numbers<[1], [0], [0], [1], [0, 0, 1, 1], [], []>} : vector<64x64xf32>, vector<64x128xf32>, vector<64x128xf32> -> vector<64x128xf32>
    %5 = vector.broadcast %2 : vector<1x128xf32> to vector<64x128xf32>
    %6 = arith.addf %4, %5 : vector<64x128xf32>
    %cst_5 = arith.constant 0.000000e+00 : f32
    %7 = vector.broadcast %cst_5 : f32 to vector<8x32xf32>
    %cst_6 = arith.constant 0.000000e+00 : f32
    %8 = vector.broadcast %cst_6 : f32 to vector<8x32xf32>
    %9 = vector.extract_strided_slice %6 {offsets = [0, 0], sizes = [8, 128], strides = [1, 1]} : vector<64x128xf32> to vector<8x128xf32>
    %cst_7 = arith.constant dense<0.000000e+00> : vector<8x128xf32>
    %10 = tpu.matmul %7, %1, %cst_7 {dimension_numbers = #tpu.dot_dimension_numbers<[1], [0], [0], [1], [0, 0, 1, 1], [], []>} : vector<8x32xf32>, vector<32x128xf32>, vector<8x128xf32> -> vector<8x128xf32>
    %11 = arith.addf %9, %10 : vector<8x128xf32>
    %12 = math.tanh %11 : vector<8x128xf32>
    %13 = vector.extract_strided_slice %12 {offsets = [0, 0], sizes = [8, 32], strides = [1, 1]} : vector<8x128xf32> to vector<8x32xf32>
    %cst_8 = arith.constant 5.000000e-01 : f32
    %14 = vector.broadcast %cst_8 : f32 to vector<8x32xf32>
    %15 = arith.mulf %14, %13 : vector<8x32xf32>
    %cst_9 = arith.constant 5.000000e-01 : f32
    %16 = vector.broadcast %cst_9 : f32 to vector<8x32xf32>
    %17 = arith.addf %15, %16 : vector<8x32xf32>
    %18 = vector.extract_strided_slice %12 {offsets = [0, 32], sizes = [8, 32], strides = [1, 1]} : vector<8x128xf32> to vector<8x32xf32>
    %cst_10 = arith.constant 5.000000e-01 : f32
    %19 = vector.broadcast %cst_10 : f32 to vector<8x32xf32>
    %20 = arith.mulf %19, %18 : vector<8x32xf32>
    %cst_11 = arith.constant 5.000000e-01 : f32
    %21 = vector.broadcast %cst_11 : f32 to vector<8x32xf32>
    %22 = arith.addf %20, %21 : vector<8x32xf32>
    %23 = vector.extract_strided_slice %12 {offsets = [0, 64], sizes = [8, 32], strides = [1, 1]} : vector<8x128xf32> to vector<8x32xf32>
    %24 = vector.extract_strided_slice %12 {offsets = [0, 96], sizes = [8, 32], strides = [1, 1]} : vector<8x128xf32> to vector<8x32xf32>
    %cst_12 = arith.constant 5.000000e-01 : f32
    %25 = vector.broadcast %cst_12 : f32 to vector<8x32xf32>
    %26 = arith.mulf %25, %24 : vector<8x32xf32>
    %cst_13 = arith.constant 5.000000e-01 : f32
    %27 = vector.broadcast %cst_13 : f32 to vector<8x32xf32>
    %28 = arith.addf %26, %27 : vector<8x32xf32>
    %29 = arith.mulf %22, %8 : vector<8x32xf32>
    %30 = arith.mulf %17, %23 : vector<8x32xf32>
    %31 = arith.addf %29, %30 : vector<8x32xf32>
    %32 = math.tanh %31 : vector<8x32xf32>
    %33 = arith.mulf %28, %32 : vector<8x32xf32>
    %34 = vector.extract_strided_slice %6 {offsets = [8, 0], sizes = [8, 128], strides = [1, 1]} : vector<64x128xf32> to vector<8x128xf32>
    %cst_14 = arith.constant dense<0.000000e+00> : vector<8x128xf32>
    %35 = tpu.matmul %33, %1, %cst_14 {dimension_numbers = #tpu.dot_dimension_numbers<[1], [0], [0], [1], [0, 0, 1, 1], [], []>} : vector<8x32xf32>, vector<32x128xf32>, vector<8x128xf32> -> vector<8x128xf32>
    %36 = arith.addf %34, %35 : vector<8x128xf32>
    %37 = math.tanh %36 : vector<8x128xf32>
    %38 = vector.extract_strided_slice %37 {offsets = [0, 0], sizes = [8, 32], strides = [1, 1]} : vector<8x128xf32> to vector<8x32xf32>
    %cst_15 = arith.constant 5.000000e-01 : f32
    %39 = vector.broadcast %cst_15 : f32 to vector<8x32xf32>
    %40 = arith.mulf %39, %38 : vector<8x32xf32>
    %cst_16 = arith.constant 5.000000e-01 : f32
    %41 = vector.broadcast %cst_16 : f32 to vector<8x32xf32>
    %42 = arith.addf %40, %41 : vector<8x32xf32>
    %43 = vector.extract_strided_slice %37 {offsets = [0, 32], sizes = [8, 32], strides = [1, 1]} : vector<8x128xf32> to vector<8x32xf32>
    %cst_17 = arith.constant 5.000000e-01 : f32
    %44 = vector.broadcast %cst_17 : f32 to vector<8x32xf32>
    %45 = arith.mulf %44, %43 : vector<8x32xf32>
    %cst_18 = arith.constant 5.000000e-01 : f32
    %46 = vector.broadcast %cst_18 : f32 to vector<8x32xf32>
    %47 = arith.addf %45, %46 : vector<8x32xf32>
    %48 = vector.extract_strided_slice %37 {offsets = [0, 64], sizes = [8, 32], strides = [1, 1]} : vector<8x128xf32> to vector<8x32xf32>
    %49 = vector.extract_strided_slice %37 {offsets = [0, 96], sizes = [8, 32], strides = [1, 1]} : vector<8x128xf32> to vector<8x32xf32>
    %cst_19 = arith.constant 5.000000e-01 : f32
    %50 = vector.broadcast %cst_19 : f32 to vector<8x32xf32>
    %51 = arith.mulf %50, %49 : vector<8x32xf32>
    %cst_20 = arith.constant 5.000000e-01 : f32
    %52 = vector.broadcast %cst_20 : f32 to vector<8x32xf32>
    %53 = arith.addf %51, %52 : vector<8x32xf32>
    %54 = arith.mulf %47, %31 : vector<8x32xf32>
    %55 = arith.mulf %42, %48 : vector<8x32xf32>
    %56 = arith.addf %54, %55 : vector<8x32xf32>
    %57 = math.tanh %56 : vector<8x32xf32>
    %58 = arith.mulf %53, %57 : vector<8x32xf32>
    %59 = vector.extract_strided_slice %6 {offsets = [16, 0], sizes = [8, 128], strides = [1, 1]} : vector<64x128xf32> to vector<8x128xf32>
    %cst_21 = arith.constant dense<0.000000e+00> : vector<8x128xf32>
    %60 = tpu.matmul %58, %1, %cst_21 {dimension_numbers = #tpu.dot_dimension_numbers<[1], [0], [0], [1], [0, 0, 1, 1], [], []>} : vector<8x32xf32>, vector<32x128xf32>, vector<8x128xf32> -> vector<8x128xf32>
    %61 = arith.addf %59, %60 : vector<8x128xf32>
    %62 = math.tanh %61 : vector<8x128xf32>
    %63 = vector.extract_strided_slice %62 {offsets = [0, 0], sizes = [8, 32], strides = [1, 1]} : vector<8x128xf32> to vector<8x32xf32>
    %cst_22 = arith.constant 5.000000e-01 : f32
    %64 = vector.broadcast %cst_22 : f32 to vector<8x32xf32>
    %65 = arith.mulf %64, %63 : vector<8x32xf32>
    %cst_23 = arith.constant 5.000000e-01 : f32
    %66 = vector.broadcast %cst_23 : f32 to vector<8x32xf32>
    %67 = arith.addf %65, %66 : vector<8x32xf32>
    %68 = vector.extract_strided_slice %62 {offsets = [0, 32], sizes = [8, 32], strides = [1, 1]} : vector<8x128xf32> to vector<8x32xf32>
    %cst_24 = arith.constant 5.000000e-01 : f32
    %69 = vector.broadcast %cst_24 : f32 to vector<8x32xf32>
    %70 = arith.mulf %69, %68 : vector<8x32xf32>
    %cst_25 = arith.constant 5.000000e-01 : f32
    %71 = vector.broadcast %cst_25 : f32 to vector<8x32xf32>
    %72 = arith.addf %70, %71 : vector<8x32xf32>
    %73 = vector.extract_strided_slice %62 {offsets = [0, 64], sizes = [8, 32], strides = [1, 1]} : vector<8x128xf32> to vector<8x32xf32>
    %74 = vector.extract_strided_slice %62 {offsets = [0, 96], sizes = [8, 32], strides = [1, 1]} : vector<8x128xf32> to vector<8x32xf32>
    %cst_26 = arith.constant 5.000000e-01 : f32
    %75 = vector.broadcast %cst_26 : f32 to vector<8x32xf32>
    %76 = arith.mulf %75, %74 : vector<8x32xf32>
    %cst_27 = arith.constant 5.000000e-01 : f32
    %77 = vector.broadcast %cst_27 : f32 to vector<8x32xf32>
    %78 = arith.addf %76, %77 : vector<8x32xf32>
    %79 = arith.mulf %72, %56 : vector<8x32xf32>
    %80 = arith.mulf %67, %73 : vector<8x32xf32>
    %81 = arith.addf %79, %80 : vector<8x32xf32>
    %82 = math.tanh %81 : vector<8x32xf32>
    %83 = arith.mulf %78, %82 : vector<8x32xf32>
    %84 = vector.extract_strided_slice %6 {offsets = [24, 0], sizes = [8, 128], strides = [1, 1]} : vector<64x128xf32> to vector<8x128xf32>
    %cst_28 = arith.constant dense<0.000000e+00> : vector<8x128xf32>
    %85 = tpu.matmul %83, %1, %cst_28 {dimension_numbers = #tpu.dot_dimension_numbers<[1], [0], [0], [1], [0, 0, 1, 1], [], []>} : vector<8x32xf32>, vector<32x128xf32>, vector<8x128xf32> -> vector<8x128xf32>
    %86 = arith.addf %84, %85 : vector<8x128xf32>
    %87 = math.tanh %86 : vector<8x128xf32>
    %88 = vector.extract_strided_slice %87 {offsets = [0, 0], sizes = [8, 32], strides = [1, 1]} : vector<8x128xf32> to vector<8x32xf32>
    %cst_29 = arith.constant 5.000000e-01 : f32
    %89 = vector.broadcast %cst_29 : f32 to vector<8x32xf32>
    %90 = arith.mulf %89, %88 : vector<8x32xf32>
    %cst_30 = arith.constant 5.000000e-01 : f32
    %91 = vector.broadcast %cst_30 : f32 to vector<8x32xf32>
    %92 = arith.addf %90, %91 : vector<8x32xf32>
    %93 = vector.extract_strided_slice %87 {offsets = [0, 32], sizes = [8, 32], strides = [1, 1]} : vector<8x128xf32> to vector<8x32xf32>
    %cst_31 = arith.constant 5.000000e-01 : f32
    %94 = vector.broadcast %cst_31 : f32 to vector<8x32xf32>
    %95 = arith.mulf %94, %93 : vector<8x32xf32>
    %cst_32 = arith.constant 5.000000e-01 : f32
    %96 = vector.broadcast %cst_32 : f32 to vector<8x32xf32>
    %97 = arith.addf %95, %96 : vector<8x32xf32>
    %98 = vector.extract_strided_slice %87 {offsets = [0, 64], sizes = [8, 32], strides = [1, 1]} : vector<8x128xf32> to vector<8x32xf32>
    %99 = vector.extract_strided_slice %87 {offsets = [0, 96], sizes = [8, 32], strides = [1, 1]} : vector<8x128xf32> to vector<8x32xf32>
    %cst_33 = arith.constant 5.000000e-01 : f32
    %100 = vector.broadcast %cst_33 : f32 to vector<8x32xf32>
    %101 = arith.mulf %100, %99 : vector<8x32xf32>
    %cst_34 = arith.constant 5.000000e-01 : f32
    %102 = vector.broadcast %cst_34 : f32 to vector<8x32xf32>
    %103 = arith.addf %101, %102 : vector<8x32xf32>
    %104 = arith.mulf %97, %81 : vector<8x32xf32>
    %105 = arith.mulf %92, %98 : vector<8x32xf32>
    %106 = arith.addf %104, %105 : vector<8x32xf32>
    %107 = math.tanh %106 : vector<8x32xf32>
    %108 = arith.mulf %103, %107 : vector<8x32xf32>
    %109 = vector.extract_strided_slice %6 {offsets = [32, 0], sizes = [8, 128], strides = [1, 1]} : vector<64x128xf32> to vector<8x128xf32>
    %cst_35 = arith.constant dense<0.000000e+00> : vector<8x128xf32>
    %110 = tpu.matmul %108, %1, %cst_35 {dimension_numbers = #tpu.dot_dimension_numbers<[1], [0], [0], [1], [0, 0, 1, 1], [], []>} : vector<8x32xf32>, vector<32x128xf32>, vector<8x128xf32> -> vector<8x128xf32>
    %111 = arith.addf %109, %110 : vector<8x128xf32>
    %112 = math.tanh %111 : vector<8x128xf32>
    %113 = vector.extract_strided_slice %112 {offsets = [0, 0], sizes = [8, 32], strides = [1, 1]} : vector<8x128xf32> to vector<8x32xf32>
    %cst_36 = arith.constant 5.000000e-01 : f32
    %114 = vector.broadcast %cst_36 : f32 to vector<8x32xf32>
    %115 = arith.mulf %114, %113 : vector<8x32xf32>
    %cst_37 = arith.constant 5.000000e-01 : f32
    %116 = vector.broadcast %cst_37 : f32 to vector<8x32xf32>
    %117 = arith.addf %115, %116 : vector<8x32xf32>
    %118 = vector.extract_strided_slice %112 {offsets = [0, 32], sizes = [8, 32], strides = [1, 1]} : vector<8x128xf32> to vector<8x32xf32>
    %cst_38 = arith.constant 5.000000e-01 : f32
    %119 = vector.broadcast %cst_38 : f32 to vector<8x32xf32>
    %120 = arith.mulf %119, %118 : vector<8x32xf32>
    %cst_39 = arith.constant 5.000000e-01 : f32
    %121 = vector.broadcast %cst_39 : f32 to vector<8x32xf32>
    %122 = arith.addf %120, %121 : vector<8x32xf32>
    %123 = vector.extract_strided_slice %112 {offsets = [0, 64], sizes = [8, 32], strides = [1, 1]} : vector<8x128xf32> to vector<8x32xf32>
    %124 = vector.extract_strided_slice %112 {offsets = [0, 96], sizes = [8, 32], strides = [1, 1]} : vector<8x128xf32> to vector<8x32xf32>
    %cst_40 = arith.constant 5.000000e-01 : f32
    %125 = vector.broadcast %cst_40 : f32 to vector<8x32xf32>
    %126 = arith.mulf %125, %124 : vector<8x32xf32>
    %cst_41 = arith.constant 5.000000e-01 : f32
    %127 = vector.broadcast %cst_41 : f32 to vector<8x32xf32>
    %128 = arith.addf %126, %127 : vector<8x32xf32>
    %129 = arith.mulf %122, %106 : vector<8x32xf32>
    %130 = arith.mulf %117, %123 : vector<8x32xf32>
    %131 = arith.addf %129, %130 : vector<8x32xf32>
    %132 = math.tanh %131 : vector<8x32xf32>
    %133 = arith.mulf %128, %132 : vector<8x32xf32>
    %134 = vector.extract_strided_slice %6 {offsets = [40, 0], sizes = [8, 128], strides = [1, 1]} : vector<64x128xf32> to vector<8x128xf32>
    %cst_42 = arith.constant dense<0.000000e+00> : vector<8x128xf32>
    %135 = tpu.matmul %133, %1, %cst_42 {dimension_numbers = #tpu.dot_dimension_numbers<[1], [0], [0], [1], [0, 0, 1, 1], [], []>} : vector<8x32xf32>, vector<32x128xf32>, vector<8x128xf32> -> vector<8x128xf32>
    %136 = arith.addf %134, %135 : vector<8x128xf32>
    %137 = math.tanh %136 : vector<8x128xf32>
    %138 = vector.extract_strided_slice %137 {offsets = [0, 0], sizes = [8, 32], strides = [1, 1]} : vector<8x128xf32> to vector<8x32xf32>
    %cst_43 = arith.constant 5.000000e-01 : f32
    %139 = vector.broadcast %cst_43 : f32 to vector<8x32xf32>
    %140 = arith.mulf %139, %138 : vector<8x32xf32>
    %cst_44 = arith.constant 5.000000e-01 : f32
    %141 = vector.broadcast %cst_44 : f32 to vector<8x32xf32>
    %142 = arith.addf %140, %141 : vector<8x32xf32>
    %143 = vector.extract_strided_slice %137 {offsets = [0, 32], sizes = [8, 32], strides = [1, 1]} : vector<8x128xf32> to vector<8x32xf32>
    %cst_45 = arith.constant 5.000000e-01 : f32
    %144 = vector.broadcast %cst_45 : f32 to vector<8x32xf32>
    %145 = arith.mulf %144, %143 : vector<8x32xf32>
    %cst_46 = arith.constant 5.000000e-01 : f32
    %146 = vector.broadcast %cst_46 : f32 to vector<8x32xf32>
    %147 = arith.addf %145, %146 : vector<8x32xf32>
    %148 = vector.extract_strided_slice %137 {offsets = [0, 64], sizes = [8, 32], strides = [1, 1]} : vector<8x128xf32> to vector<8x32xf32>
    %149 = vector.extract_strided_slice %137 {offsets = [0, 96], sizes = [8, 32], strides = [1, 1]} : vector<8x128xf32> to vector<8x32xf32>
    %cst_47 = arith.constant 5.000000e-01 : f32
    %150 = vector.broadcast %cst_47 : f32 to vector<8x32xf32>
    %151 = arith.mulf %150, %149 : vector<8x32xf32>
    %cst_48 = arith.constant 5.000000e-01 : f32
    %152 = vector.broadcast %cst_48 : f32 to vector<8x32xf32>
    %153 = arith.addf %151, %152 : vector<8x32xf32>
    %154 = arith.mulf %147, %131 : vector<8x32xf32>
    %155 = arith.mulf %142, %148 : vector<8x32xf32>
    %156 = arith.addf %154, %155 : vector<8x32xf32>
    %157 = math.tanh %156 : vector<8x32xf32>
    %158 = arith.mulf %153, %157 : vector<8x32xf32>
    %159 = vector.extract_strided_slice %6 {offsets = [48, 0], sizes = [8, 128], strides = [1, 1]} : vector<64x128xf32> to vector<8x128xf32>
    %cst_49 = arith.constant dense<0.000000e+00> : vector<8x128xf32>
    %160 = tpu.matmul %158, %1, %cst_49 {dimension_numbers = #tpu.dot_dimension_numbers<[1], [0], [0], [1], [0, 0, 1, 1], [], []>} : vector<8x32xf32>, vector<32x128xf32>, vector<8x128xf32> -> vector<8x128xf32>
    %161 = arith.addf %159, %160 : vector<8x128xf32>
    %162 = math.tanh %161 : vector<8x128xf32>
    %163 = vector.extract_strided_slice %162 {offsets = [0, 0], sizes = [8, 32], strides = [1, 1]} : vector<8x128xf32> to vector<8x32xf32>
    %cst_50 = arith.constant 5.000000e-01 : f32
    %164 = vector.broadcast %cst_50 : f32 to vector<8x32xf32>
    %165 = arith.mulf %164, %163 : vector<8x32xf32>
    %cst_51 = arith.constant 5.000000e-01 : f32
    %166 = vector.broadcast %cst_51 : f32 to vector<8x32xf32>
    %167 = arith.addf %165, %166 : vector<8x32xf32>
    %168 = vector.extract_strided_slice %162 {offsets = [0, 32], sizes = [8, 32], strides = [1, 1]} : vector<8x128xf32> to vector<8x32xf32>
    %cst_52 = arith.constant 5.000000e-01 : f32
    %169 = vector.broadcast %cst_52 : f32 to vector<8x32xf32>
    %170 = arith.mulf %169, %168 : vector<8x32xf32>
    %cst_53 = arith.constant 5.000000e-01 : f32
    %171 = vector.broadcast %cst_53 : f32 to vector<8x32xf32>
    %172 = arith.addf %170, %171 : vector<8x32xf32>
    %173 = vector.extract_strided_slice %162 {offsets = [0, 64], sizes = [8, 32], strides = [1, 1]} : vector<8x128xf32> to vector<8x32xf32>
    %174 = vector.extract_strided_slice %162 {offsets = [0, 96], sizes = [8, 32], strides = [1, 1]} : vector<8x128xf32> to vector<8x32xf32>
    %cst_54 = arith.constant 5.000000e-01 : f32
    %175 = vector.broadcast %cst_54 : f32 to vector<8x32xf32>
    %176 = arith.mulf %175, %174 : vector<8x32xf32>
    %cst_55 = arith.constant 5.000000e-01 : f32
    %177 = vector.broadcast %cst_55 : f32 to vector<8x32xf32>
    %178 = arith.addf %176, %177 : vector<8x32xf32>
    %179 = arith.mulf %172, %156 : vector<8x32xf32>
    %180 = arith.mulf %167, %173 : vector<8x32xf32>
    %181 = arith.addf %179, %180 : vector<8x32xf32>
    %182 = math.tanh %181 : vector<8x32xf32>
    %183 = arith.mulf %178, %182 : vector<8x32xf32>
    %184 = vector.extract_strided_slice %6 {offsets = [56, 0], sizes = [8, 128], strides = [1, 1]} : vector<64x128xf32> to vector<8x128xf32>
    %cst_56 = arith.constant dense<0.000000e+00> : vector<8x128xf32>
    %185 = tpu.matmul %183, %1, %cst_56 {dimension_numbers = #tpu.dot_dimension_numbers<[1], [0], [0], [1], [0, 0, 1, 1], [], []>} : vector<8x32xf32>, vector<32x128xf32>, vector<8x128xf32> -> vector<8x128xf32>
    %186 = arith.addf %184, %185 : vector<8x128xf32>
    %187 = math.tanh %186 : vector<8x128xf32>
    %188 = vector.extract_strided_slice %187 {offsets = [0, 0], sizes = [8, 32], strides = [1, 1]} : vector<8x128xf32> to vector<8x32xf32>
    %cst_57 = arith.constant 5.000000e-01 : f32
    %189 = vector.broadcast %cst_57 : f32 to vector<8x32xf32>
    %190 = arith.mulf %189, %188 : vector<8x32xf32>
    %cst_58 = arith.constant 5.000000e-01 : f32
    %191 = vector.broadcast %cst_58 : f32 to vector<8x32xf32>
    %192 = arith.addf %190, %191 : vector<8x32xf32>
    %193 = vector.extract_strided_slice %187 {offsets = [0, 32], sizes = [8, 32], strides = [1, 1]} : vector<8x128xf32> to vector<8x32xf32>
    %cst_59 = arith.constant 5.000000e-01 : f32
    %194 = vector.broadcast %cst_59 : f32 to vector<8x32xf32>
    %195 = arith.mulf %194, %193 : vector<8x32xf32>
    %cst_60 = arith.constant 5.000000e-01 : f32
    %196 = vector.broadcast %cst_60 : f32 to vector<8x32xf32>
    %197 = arith.addf %195, %196 : vector<8x32xf32>
    %198 = vector.extract_strided_slice %187 {offsets = [0, 64], sizes = [8, 32], strides = [1, 1]} : vector<8x128xf32> to vector<8x32xf32>
    %199 = vector.extract_strided_slice %187 {offsets = [0, 96], sizes = [8, 32], strides = [1, 1]} : vector<8x128xf32> to vector<8x32xf32>
    %cst_61 = arith.constant 5.000000e-01 : f32
    %200 = vector.broadcast %cst_61 : f32 to vector<8x32xf32>
    %201 = arith.mulf %200, %199 : vector<8x32xf32>
    %cst_62 = arith.constant 5.000000e-01 : f32
    %202 = vector.broadcast %cst_62 : f32 to vector<8x32xf32>
    %203 = arith.addf %201, %202 : vector<8x32xf32>
    %204 = arith.mulf %197, %181 : vector<8x32xf32>
    %205 = arith.mulf %192, %198 : vector<8x32xf32>
    %206 = arith.addf %204, %205 : vector<8x32xf32>
    %207 = math.tanh %206 : vector<8x32xf32>
    %208 = arith.mulf %203, %207 : vector<8x32xf32>
    %c104 = arith.constant 104 : index
    %c0_63 = arith.constant 0 : index
    %209 = vector.load %arg1[%c104, %c0_63] : memref<656x128xf32, #tpu.memory_space<vmem>>, vector<64x128xf32>
    %c168 = arith.constant 168 : index
    %c0_64 = arith.constant 0 : index
    %210 = vector.load %arg1[%c168, %c0_64] : memref<656x128xf32, #tpu.memory_space<vmem>>, vector<8x128xf32>
    %c56 = arith.constant 56 : index
    %c0_65 = arith.constant 0 : index
    %211 = vector.load %arg0[%c56, %c0_65] : memref<64x64xf32, #tpu.memory_space<vmem>>, vector<8x64xf32>
    %cst_66 = arith.constant dense<0.000000e+00> : vector<8x128xf32>
    %212 = tpu.matmul %211, %209, %cst_66 {dimension_numbers = #tpu.dot_dimension_numbers<[1], [0], [0], [1], [0, 0, 1, 1], [], []>} : vector<8x64xf32>, vector<64x128xf32>, vector<8x128xf32> -> vector<8x128xf32>
    %213 = arith.addf %212, %210 : vector<8x128xf32>
    %214 = math.tanh %213 : vector<8x128xf32>
    %215 = vector.extract_strided_slice %214 {offsets = [0, 0], sizes = [8, 32], strides = [1, 1]} : vector<8x128xf32> to vector<8x32xf32>
    %cst_67 = arith.constant 5.000000e-01 : f32
    %216 = vector.broadcast %cst_67 : f32 to vector<8x32xf32>
    %217 = arith.mulf %216, %215 : vector<8x32xf32>
    %cst_68 = arith.constant 5.000000e-01 : f32
    %218 = vector.broadcast %cst_68 : f32 to vector<8x32xf32>
    %219 = arith.addf %217, %218 : vector<8x32xf32>
    %220 = vector.extract_strided_slice %214 {offsets = [0, 64], sizes = [8, 32], strides = [1, 1]} : vector<8x128xf32> to vector<8x32xf32>
    %221 = vector.extract_strided_slice %214 {offsets = [0, 96], sizes = [8, 32], strides = [1, 1]} : vector<8x128xf32> to vector<8x32xf32>
    %cst_69 = arith.constant 5.000000e-01 : f32
    %222 = vector.broadcast %cst_69 : f32 to vector<8x32xf32>
    %223 = arith.mulf %222, %221 : vector<8x32xf32>
    %cst_70 = arith.constant 5.000000e-01 : f32
    %224 = vector.broadcast %cst_70 : f32 to vector<8x32xf32>
    %225 = arith.addf %223, %224 : vector<8x32xf32>
    %226 = arith.mulf %219, %220 : vector<8x32xf32>
    %227 = math.tanh %226 : vector<8x32xf32>
    %228 = arith.mulf %225, %227 : vector<8x32xf32>
    %229 = tpu.concatenate %208, %228 in 1 : vector<8x32xf32>, vector<8x32xf32> -> vector<8x64xf32>
    %c176 = arith.constant 176 : index
    %c0_71 = arith.constant 0 : index
    %230 = vector.load %arg1[%c176, %c0_71] : memref<656x128xf32, #tpu.memory_space<vmem>>, vector<64x128xf32>
    %c240 = arith.constant 240 : index
    %c0_72 = arith.constant 0 : index
    %231 = vector.load %arg1[%c240, %c0_72] : memref<656x128xf32, #tpu.memory_space<vmem>>, vector<8x128xf32>
    %c248 = arith.constant 248 : index
    %c0_73 = arith.constant 0 : index
    %232 = vector.load %arg1[%c248, %c0_73] : memref<656x128xf32, #tpu.memory_space<vmem>>, vector<128x128xf32>
    %c376 = arith.constant 376 : index
    %c0_74 = arith.constant 0 : index
    %233 = vector.load %arg1[%c376, %c0_74] : memref<656x128xf32, #tpu.memory_space<vmem>>, vector<8x128xf32>
    %c384 = arith.constant 384 : index
    %c0_75 = arith.constant 0 : index
    %234 = vector.load %arg1[%c384, %c0_75] : memref<656x128xf32, #tpu.memory_space<vmem>>, vector<128x128xf32>
    %c512 = arith.constant 512 : index
    %c0_76 = arith.constant 0 : index
    %235 = vector.load %arg1[%c512, %c0_76] : memref<656x128xf32, #tpu.memory_space<vmem>>, vector<8x128xf32>
    %c520 = arith.constant 520 : index
    %c0_77 = arith.constant 0 : index
    %236 = vector.load %arg1[%c520, %c0_77] : memref<656x128xf32, #tpu.memory_space<vmem>>, vector<128x128xf32>
    %c648 = arith.constant 648 : index
    %c0_78 = arith.constant 0 : index
    %237 = vector.load %arg1[%c648, %c0_78] : memref<656x128xf32, #tpu.memory_space<vmem>>, vector<8x128xf32>
    %cst_79 = arith.constant dense<0.000000e+00> : vector<8x128xf32>
    %238 = tpu.matmul %229, %230, %cst_79 {dimension_numbers = #tpu.dot_dimension_numbers<[1], [0], [0], [1], [0, 0, 1, 1], [], []>} : vector<8x64xf32>, vector<64x128xf32>, vector<8x128xf32> -> vector<8x128xf32>
    %239 = arith.addf %238, %231 : vector<8x128xf32>
    %cst_80 = arith.constant 0.000000e+00 : f32
    %240 = vector.broadcast %cst_80 : f32 to vector<8x128xf32>
    %241 = arith.maximumf %239, %240 : vector<8x128xf32>
    %cst_81 = arith.constant dense<0.000000e+00> : vector<8x128xf32>
    %242 = tpu.matmul %241, %232, %cst_81 {dimension_numbers = #tpu.dot_dimension_numbers<[1], [0], [0], [1], [0, 0, 1, 1], [], []>} : vector<8x128xf32>, vector<128x128xf32>, vector<8x128xf32> -> vector<8x128xf32>
    %243 = arith.addf %242, %233 : vector<8x128xf32>
    %cst_82 = arith.constant 0.000000e+00 : f32
    %244 = vector.broadcast %cst_82 : f32 to vector<8x128xf32>
    %245 = arith.maximumf %243, %244 : vector<8x128xf32>
    %cst_83 = arith.constant dense<0.000000e+00> : vector<8x128xf32>
    %246 = tpu.matmul %245, %234, %cst_83 {dimension_numbers = #tpu.dot_dimension_numbers<[1], [0], [0], [1], [0, 0, 1, 1], [], []>} : vector<8x128xf32>, vector<128x128xf32>, vector<8x128xf32> -> vector<8x128xf32>
    %247 = arith.addf %246, %235 : vector<8x128xf32>
    %cst_84 = arith.constant 0.000000e+00 : f32
    %248 = vector.broadcast %cst_84 : f32 to vector<8x128xf32>
    %249 = arith.maximumf %247, %248 : vector<8x128xf32>
    %cst_85 = arith.constant dense<0.000000e+00> : vector<8x128xf32>
    %250 = tpu.matmul %249, %236, %cst_85 {dimension_numbers = #tpu.dot_dimension_numbers<[1], [0], [0], [1], [0, 0, 1, 1], [], []>} : vector<8x128xf32>, vector<128x128xf32>, vector<8x128xf32> -> vector<8x128xf32>
    %251 = arith.addf %250, %237 : vector<8x128xf32>
    %cst_86 = arith.constant dense<0xFF800000> : vector<8xf32>
    %252 = vector.multi_reduction <maximumf>, %251, %cst_86 [1] : vector<8x128xf32> to vector<8xf32>
    %253 = vector.shape_cast %252 : vector<8xf32> to vector<8x1xf32>
    %254 = vector.broadcast %253 : vector<8x1xf32> to vector<8x128xf32>
    %255 = arith.subf %251, %254 : vector<8x128xf32>
    %256 = math.exp %255 : vector<8x128xf32>
    %cst_87 = arith.constant dense<0.000000e+00> : vector<8xf32>
    %257 = vector.multi_reduction <add>, %256, %cst_87 [1] : vector<8x128xf32> to vector<8xf32>
    %258 = vector.shape_cast %257 : vector<8xf32> to vector<8x1xf32>
    %259 = vector.broadcast %258 : vector<8x1xf32> to vector<8x128xf32>
    %260 = arith.divf %256, %259 : vector<8x128xf32>
    %c0_88 = arith.constant 0 : index
    %c0_89 = arith.constant 0 : index
    %261 = vector.load %arg2[%c0_88, %c0_89] : memref<8x128xf32, #tpu.memory_space<vmem>>, vector<8x128xf32>
    tpu.vector_store %arg2[%c0_88, %c0_89], %260 {strides = array<i32>} : memref<8x128xf32, #tpu.memory_space<vmem>>, vector<8x128xf32>,
    return
  }
}

</mosaic_0001>

<llo_original>
// kernel: bilstm_forward.1
$region0: #{bilstm_forward.1}
  #allocation0 [shape = 'u32[]', space=smem, size = 0x4, offset = 0x4, fixed_abs, tag = 'smem constant byte address 0x4 - core index']
  #allocation1 [shape = 'u32[144,128]{1,0:T(1,128)}', space=vmem, size = 0x12000, scoped, tag = 'internal scratch']
  %s0 = inlined_call_operand.vmem [shape: f32[64,64], index: 0, kind: input, shape index: {}]
  %s1 = inlined_call_operand.hbm [shape: f32[656,128], index: 1, kind: input, shape index: {}]
  %s2 = inlined_call_operand.vmem [shape: f32[8,128], index: 2, kind: output, shape index: {}]
  %s3 = sld [smem:[#allocation0]]
  $region22: #{bilstm_forward.1} parent=0
    _
  %s5 = ssub.s32 1, %s3
  %s6 = scalar_select 0, %s5, %s3
  $region1: #{bilstm_forward.1} parent=0
    #allocation2 [shape = 'u8[335872]{0}', space=vmem, size = 0x52000, scoped, tag = 'input window, operand 1, single buffered']
    #allocation3 [shape = 's32[1]{0}', space=sflag, size = 0x4, scoped, tag = 'scoped memory for bilstm_forward.1']
    %7 = vsyncpa [#allocation3], 0
    // Predicated region
    $region2: #{bilstm_forward.1} parent=1 // pred_check
      _
    $region3: #{bilstm_forward.1} parent=1 // pred_check_branch
      %9 = sbr.rel (0) target = $region5
    $region4: #{bilstm_forward.1} parent=1 // pred_region
      _
    $region5: #{bilstm_forward.1} parent=1 // pred_fallthru
      _
    // Predicated region
    $region6: #{bilstm_forward.1} parent=1 // pred_check
      _
    $region7: #{bilstm_forward.1} parent=1 // pred_check_branch
      %11 = sbr.rel (0) target = $region9
    $region8: #{bilstm_forward.1} parent=1 // pred_region
      %s13 = ssub.s32 10496, 10496
      %14 = vsyncadd [#allocation3], %s13
      %s15 = sshll.u32 [#allocation2], 4
      %s16 = int_to_ptr.vmem [resolvable:$true] %s15
      %21 = dma.hbm_to_vmem [thread:$0]  %s1, 10496, %s16, [#allocation3], 128, 128, 8
    $region9: #{bilstm_forward.1} parent=1 // pred_fallthru
      _
    // Predicated region
    $region10: #{bilstm_forward.1} parent=1 // pred_check
      _
    $region11: #{bilstm_forward.1} parent=1 // pred_check_branch
      %23 = sbr.rel (0) target = $region13
    $region12: #{bilstm_forward.1} parent=1 // pred_region
      %24 = dma.done [#allocation3], 10496
    $region13: #{bilstm_forward.1} parent=1 // pred_fallthru
      _
    %v25 = vld [vmem:[#allocation2] sm:$0xff]
    %v26 = vld [vmem:[#allocation2 + $0x8] sm:$0xff]
    %v27 = vld [vmem:[#allocation2 + $0x10] sm:$0xff]
    %v28 = vld [vmem:[#allocation2 + $0x18] sm:$0xff]
    %v29 = vld [vmem:[#allocation2 + $0x20] sm:$0xff]
    %v30 = vld [vmem:[#allocation2 + $0x28] sm:$0xff]
    %v31 = vld [vmem:[#allocation2 + $0x30] sm:$0xff]
    %v32 = vld [vmem:[#allocation2 + $0x38] sm:$0xff]
    %v33 = vld [vmem:[#allocation2 + $0x40] sm:$0xff]
    %v34 = vld [vmem:[#allocation2 + $0x48] sm:$0xff]
    %v35 = vld [vmem:[#allocation2 + $0x50] sm:$0xff]
    %v36 = vld [vmem:[#allocation2 + $0x58] sm:$0xff]
    %v37 = vld [vmem:[#allocation2 + $0x60] sm:$0x1]
    %v38 = vld [vmem:[%s0] sm:$0xff]
    %v39 = vld [vmem:[%s0 + $0x8] sm:$0xff]
    %v40 = vld [vmem:[%s0 + $0x10] sm:$0xff]
    %v41 = vld [vmem:[%s0 + $0x18] sm:$0xff]
    %v42 = vld [vmem:[%s0 + $0x20] sm:$0xff]
    %v43 = vld [vmem:[%s0 + $0x28] sm:$0xff]
    %v44 = vld [vmem:[%s0 + $0x30] sm:$0xff]
    %v45 = vld [vmem:[%s0 + $0x38] sm:$0xff]
    %v46 = vlaneseq
    %v47 = vshrl.u32 %v46, 7
    %v48 = vsub.s32 0, %v47
    %v49 = vrot.slane %v37, %v48
    %vm50 = vcmask 523264
    %v52 = vsel %vm50, %v38, 0
    %v55 = vsel %vm50, %v39, 0
    %v58 = vsel %vm50, %v40, 0
    %v61 = vsel %vm50, %v41, 0
    %v64 = vsel %vm50, %v42, 0
    %v67 = vsel %vm50, %v43, 0
    %v70 = vsel %vm50, %v44, 0
    %v73 = vsel %vm50, %v45, 0
    %75 = vmatprep.subr.mxu0 0.0
    %76 = vmatpush1.msra.mxu0 %v25
    %77 = vmatprep.subr.mxu0 0.0
    %78 = vmatpush1.msra.mxu0 %v26
    %79 = vmatprep.subr.mxu0 0.0
    %80 = vmatpush1.msra.mxu0 %v27
    %81 = vmatprep.subr.mxu0 0.0
    %82 = vmatpush1.msra.mxu0 %v28
    %83 = vmatprep.subr.mxu0 0.0
    %84 = vmatpush1.msra.mxu0 %v29
    %85 = vmatprep.subr.mxu0 0.0
    %86 = vmatpush1.msra.mxu0 %v30
    %87 = vmatprep.subr.mxu0 0.0
    %88 = vmatpush1.msra.mxu0 %v31
    %89 = vmatprep.subr.mxu0 0.0
    %90 = vmatpush1.msra.mxu0 %v32
    %91 = vmatprep.subr.mxu0 0.0
    %92 = vmatpush1.msra.mxu0 0.0
    %93 = vmatprep.subr.mxu0 0.0
    %94 = vmatpush1.msra.mxu0 0.0
    %95 = vmatprep.subr.mxu0 0.0
    %96 = vmatpush1.msra.mxu0 0.0
    %97 = vmatprep.subr.mxu0 0.0
    %98 = vmatpush1.msra.mxu0 0.0
    %99 = vmatprep.subr.mxu0 0.0
    %100 = vmatpush1.msra.mxu0 0.0
    %101 = vmatprep.subr.mxu0 0.0
    %102 = vmatpush1.msra.mxu0 0.0
    %103 = vmatprep.subr.mxu0 0.0
    %104 = vmatpush1.msra.mxu0 0.0
    %105 = vmatprep.subr.mxu0 0.0
    %106 = vmatpush1.msra.mxu0 0.0
    %107 = vmatprep.subr.mxu0 0.0
    %108 = vmatpush1.msra.mxu0 0.0
    %109 = vmatprep.subr.mxu0 0.0
    %110 = vmatpush1.msra.mxu0 0.0
    %111 = vmatprep.subr.mxu0 0.0
    %112 = vmatpush1.msra.mxu0 0.0
    %113 = vmatprep.subr.mxu0 0.0
    %114 = vmatpush1.msra.mxu0 0.0
    %115 = vmatprep.subr.mxu0 0.0
    %116 = vmatpush1.msra.mxu0 0.0
    %117 = vmatprep.subr.mxu0 0.0
    %118 = vmatpush1.msra.mxu0 0.0
    %119 = vmatprep.subr.mxu0 0.0
    %120 = vmatpush1.msra.mxu0 0.0
    %121 = vmatprep.subr.mxu0 0.0
    %122 = vmatpush1.msra.mxu0 0.0
    %123 = vmatprep.subr.mxu0 0.0
    %124 = vmatpush1.msra.mxu0 0.0
    %125 = vmatprep.subr.mxu0 0.0
    %126 = vmatpush1.msra.mxu0 0.0
    %127 = vmatprep.subr.mxu0 0.0
    %128 = vmatpush1.msra.mxu0 0.0
    %129 = vmatprep.subr.mxu0 0.0
    %130 = vmatpush1.msra.mxu0 0.0
    %131 = vmatprep.subr.mxu0 0.0
    %132 = vmatpush1.msra.mxu0 0.0
    %133 = vmatprep.subr.mxu0 0.0
    %134 = vmatpush1.msra.mxu0 0.0
    %135 = vmatprep.subr.mxu0 0.0
    %136 = vmatpush1.msra.mxu0 0.0
    %137 = vmatprep.subr.mxu0 0.0
    %138 = vmatpush1.msra.mxu0 0.0
    %139 = vmatprep.mubr.f32.mxu0 0.0
    %140 = vmatmul.mubr.f32.gmra.mrb[0].mxu0 %v52
    %v141 = vpop.f32.mrb[0].mxu0
    %v142 = vadd.f32 %v49, %v141
    %v143 = vpop.f32.mrb[0].mxu0
    %144 = vmatprep.mubr.f32.mxu0 0.0
    %145 = vmatmul.mubr.f32.gmra.mrb[0].mxu0 %v55
    %v146 = vpop.f32.mrb[0].mxu0
    %v147 = vadd.f32 %v49, %v146
    %v148 = vpop.f32.mrb[0].mxu0
    %149 = vmatprep.mubr.f32.mxu0 0.0
    %150 = vmatmul.mubr.f32.gmra.mrb[0].mxu0 %v58
    %v151 = vpop.f32.mrb[0].mxu0
    %v152 = vadd.f32 %v49, %v151
    %v153 = vpop.f32.mrb[0].mxu0
    %154 = vmatprep.mubr.f32.mxu0 0.0
    %155 = vmatmul.mubr.f32.gmra.mrb[0].mxu0 %v61
    %v156 = vpop.f32.mrb[0].mxu0
    %v157 = vadd.f32 %v49, %v156
    %v158 = vpop.f32.mrb[0].mxu0
    %159 = vmatprep.mubr.f32.mxu0 0.0
    %160 = vmatmul.mubr.f32.gmra.mrb[0].mxu0 %v64
    %v161 = vpop.f32.mrb[0].mxu0
    %v162 = vadd.f32 %v49, %v161
    %v163 = vpop.f32.mrb[0].mxu0
    %164 = vmatprep.mubr.f32.mxu0 0.0
    %165 = vmatmul.mubr.f32.gmra.mrb[0].mxu0 %v67
    %v166 = vpop.f32.mrb[0].mxu0
    %v167 = vadd.f32 %v49, %v166
    %v168 = vpop.f32.mrb[0].mxu0
    %169 = vmatprep.mubr.f32.mxu0 0.0
    %170 = vmatmul.mubr.f32.gmra.mrb[0].mxu0 %v70
    %v171 = vpop.f32.mrb[0].mxu0
    %v172 = vadd.f32 %v49, %v171
    %v173 = vpop.f32.mrb[0].mxu0
    %174 = vmatprep.mubr.f32.mxu0 0.0
    %175 = vmatmul.mubr.f32.gmra.mrb[0].mxu0 %v73
    %v176 = vpop.f32.mrb[0].mxu0
    %v177 = vadd.f32 %v49, %v176
    %v178 = vpop.f32.mrb[0].mxu0
    %179 = vdwg.mxu0
    %vm180 = vcmask 261120
    %v182 = vsel %vm180, 0.0, 0
    %184 = vmatprep.subr.mxu0 0.0
    %185 = vmatpush1.msra.mxu0 %v33
    %186 = vmatprep.subr.mxu0 0.0
    %187 = vmatpush1.msra.mxu0 %v34
    %188 = vmatprep.subr.mxu0 0.0
    %189 = vmatpush1.msra.mxu0 %v35
    %190 = vmatprep.subr.mxu0 0.0
    %191 = vmatpush1.msra.mxu0 %v36
    %192 = vmatprep.subr.mxu0 0.0
    %193 = vmatpush1.msra.mxu0 0.0
    %194 = vmatprep.subr.mxu0 0.0
    %195 = vmatpush1.msra.mxu0 0.0
    %196 = vmatprep.subr.mxu0 0.0
    %197 = vmatpush1.msra.mxu0 0.0
    %198 = vmatprep.subr.mxu0 0.0
    %199 = vmatpush1.msra.mxu0 0.0
    %200 = vmatprep.subr.mxu0 0.0
    %201 = vmatpush1.msra.mxu0 0.0
    %202 = vmatprep.subr.mxu0 0.0
    %203 = vmatpush1.msra.mxu0 0.0
    %204 = vmatprep.subr.mxu0 0.0
    %205 = vmatpush1.msra.mxu0 0.0
    %206 = vmatprep.subr.mxu0 0.0
    %207 = vmatpush1.msra.mxu0 0.0
    %208 = vmatprep.subr.mxu0 0.0
    %209 = vmatpush1.msra.mxu0 0.0
    %210 = vmatprep.subr.mxu0 0.0
    %211 = vmatpush1.msra.mxu0 0.0
    %212 = vmatprep.subr.mxu0 0.0
    %213 = vmatpush1.msra.mxu0 0.0
    %214 = vmatprep.subr.mxu0 0.0
    %215 = vmatpush1.msra.mxu0 0.0
    %216 = vmatprep.subr.mxu0 0.0
    %217 = vmatpush1.msra.mxu0 0.0
    %218 = vmatprep.subr.mxu0 0.0
    %219 = vmatpush1.msra.mxu0 0.0
    %220 = vmatprep.subr.mxu0 0.0
    %221 = vmatpush1.msra.mxu0 0.0
    %222 = vmatprep.subr.mxu0 0.0
    %223 = vmatpush1.msra.mxu0 0.0
    %224 = vmatprep.subr.mxu0 0.0
    %225 = vmatpush1.msra.mxu0 0.0
    %226 = vmatprep.subr.mxu0 0.0
    %227 = vmatpush1.msra.mxu0 0.0
    %228 = vmatprep.subr.mxu0 0.0
    %229 = vmatpush1.msra.mxu0 0.0
    %230 = vmatprep.subr.mxu0 0.0
    %231 = vmatpush1.msra.mxu0 0.0
    %232 = vmatprep.subr.mxu0 0.0
    %233 = vmatpush1.msra.mxu0 0.0
    %234 = vmatprep.subr.mxu0 0.0
    %235 = vmatpush1.msra.mxu0 0.0
    %236 = vmatprep.subr.mxu0 0.0
    %237 = vmatpush1.msra.mxu0 0.0
    %238 = vmatprep.subr.mxu0 0.0
    %239 = vmatpush1.msra.mxu0 0.0
    %240 = vmatprep.subr.mxu0 0.0
    %241 = vmatpush1.msra.mxu0 0.0
    %242 = vmatprep.subr.mxu0 0.0
    %243 = vmatpush1.msra.mxu0 0.0
    %244 = vmatprep.subr.mxu0 0.0
    %245 = vmatpush1.msra.mxu0 0.0
    %246 = vmatprep.subr.mxu0 0.0
    %247 = vmatpush1.msra.mxu0 0.0
    %248 = vmatprep.mubr.f32.mxu0 0.0
    %249 = vmatmul.mubr.f32.gmra.mrb[0].mxu0 %v182
    %v250 = vpop.f32.mrb[0].mxu0
    %v251 = vadd.f32 0.0, %v250
    %v252 = vpop.f32.mrb[0].mxu0
    %253 = vdwg.mxu0
    %v254 = vadd.f32 %v142, %v251
    %v255 = vtanh.pop %v254
    %v256 = vmul.f32 %v255, 0.5
    %v257 = vadd.f32 %v256, 0.5
    %v258 = vmul.f32 %v257, 0.0
    %260 = vrot.lane.b32.xlu0 %v255, 64
    %v261 = vpop.permute.xlu0 %260
    %v263 = vmul.f32 %v257, %v261
    %265 = vrot.lane.b32.xlu0 %v263, 32
    %v266 = vpop.permute.xlu0 %265
    %v268 = vadd.f32 %v258, %v266
    %v269 = vtanh.pop %v268
    %271 = vrot.lane.b32.xlu0 %v269, 64
    %v272 = vpop.permute.xlu0 %271
    %v274 = vmul.f32 %v257, %v272
    %276 = vrot.lane.b32.xlu0 %v274, 32
    %v277 = vpop.permute.xlu0 %276
    %v278 = vsel %vm180, %v277, 0
    %280 = vmatprep.subr.mxu0 0.0
    %281 = vmatpush1.msra.mxu0 %v33
    %282 = vmatprep.subr.mxu0 0.0
    %283 = vmatpush1.msra.mxu0 %v34
    %284 = vmatprep.subr.mxu0 0.0
    %285 = vmatpush1.msra.mxu0 %v35
    %286 = vmatprep.subr.mxu0 0.0
    %287 = vmatpush1.msra.mxu0 %v36
    %288 = vmatprep.subr.mxu0 0.0
    %289 = vmatpush1.msra.mxu0 0.0
    %290 = vmatprep.subr.mxu0 0.0
    %291 = vmatpush1.msra.mxu0 0.0
    %292 = vmatprep.subr.mxu0 0.0
    %293 = vmatpush1.msra.mxu0 0.0
    %294 = vmatprep.subr.mxu0 0.0
    %295 = vmatpush1.msra.mxu0 0.0
    %296 = vmatprep.subr.mxu0 0.0
    %297 = vmatpush1.msra.mxu0 0.0
    %298 = vmatprep.subr.mxu0 0.0
    %299 = vmatpush1.msra.mxu0 0.0
    %300 = vmatprep.subr.mxu0 0.0
    %301 = vmatpush1.msra.mxu0 0.0
    %302 = vmatprep.subr.mxu0 0.0
    %303 = vmatpush1.msra.mxu0 0.0
    %304 = vmatprep.subr.mxu0 0.0
    %305 = vmatpush1.msra.mxu0 0.0
    %306 = vmatprep.subr.mxu0 0.0
    %307 = vmatpush1.msra.mxu0 0.0
    %308 = vmatprep.subr.mxu0 0.0
    %309 = vmatpush1.msra.mxu0 0.0
    %310 = vmatprep.subr.mxu0 0.0
    %311 = vmatpush1.msra.mxu0 0.0
    %312 = vmatprep.subr.mxu0 0.0
    %313 = vmatpush1.msra.mxu0 0.0
    %314 = vmatprep.subr.mxu0 0.0
    %315 = vmatpush1.msra.mxu0 0.0
    %316 = vmatprep.subr.mxu0 0.0
    %317 = vmatpush1.msra.mxu0 0.0
    %318 = vmatprep.subr.mxu0 0.0
    %319 = vmatpush1.msra.mxu0 0.0
    %320 = vmatprep.subr.mxu0 0.0
    %321 = vmatpush1.msra.mxu0 0.0
    %322 = vmatprep.subr.mxu0 0.0
    %323 = vmatpush1.msra.mxu0 0.0
    %324 = vmatprep.subr.mxu0 0.0
    %325 = vmatpush1.msra.mxu0 0.0
    %326 = vmatprep.subr.mxu0 0.0
    %327 = vmatpush1.msra.mxu0 0.0
    %328 = vmatprep.subr.mxu0 0.0
    %329 = vmatpush1.msra.mxu0 0.0
    %330 = vmatprep.subr.mxu0 0.0
    %331 = vmatpush1.msra.mxu0 0.0
    %332 = vmatprep.subr.mxu0 0.0
    %333 = vmatpush1.msra.mxu0 0.0
    %334 = vmatprep.subr.mxu0 0.0
    %335 = vmatpush1.msra.mxu0 0.0
    %336 = vmatprep.subr.mxu0 0.0
    %337 = vmatpush1.msra.mxu0 0.0
    %338 = vmatprep.subr.mxu0 0.0
    %339 = vmatpush1.msra.mxu0 0.0
    %340 = vmatprep.subr.mxu0 0.0
    %341 = vmatpush1.msra.mxu0 0.0
    %342 = vmatprep.subr.mxu0 0.0
    %343 = vmatpush1.msra.mxu0 0.0
    %344 = vmatprep.mubr.f32.mxu0 0.0
    %345 = vmatmul.mubr.f32.gmra.mrb[0].mxu0 %v278
    %v346 = vpop.f32.mrb[0].mxu0
    %v347 = vadd.f32 0.0, %v346
    %v348 = vpop.f32.mrb[0].mxu0
    %349 = vdwg.mxu0
    %v350 = vadd.f32 %v147, %v347
    %v351 = vtanh.pop %v350
    %v352 = vmul.f32 %v351, 0.5
    %v353 = vadd.f32 %v352, 0.5
    %v354 = vmul.f32 %v353, %v268
    %356 = vrot.lane.b32.xlu0 %v351, 64
    %v357 = vpop.permute.xlu0 %356
    %v359 = vmul.f32 %v353, %v357
    %361 = vrot.lane.b32.xlu0 %v359, 32
    %v362 = vpop.permute.xlu0 %361
    %v364 = vadd.f32 %v354, %v362
    %v365 = vtanh.pop %v364
    %367 = vrot.lane.b32.xlu0 %v365, 64
    %v368 = vpop.permute.xlu0 %367
    %v370 = vmul.f32 %v353, %v368
    %372 = vrot.lane.b32.xlu0 %v370, 32
    %v373 = vpop.permute.xlu0 %372
    %v374 = vsel %vm180, %v373, 0
    %376 = vmatprep.subr.mxu0 0.0
    %377 = vmatpush1.msra.mxu0 %v33
    %378 = vmatprep.subr.mxu0 0.0
    %379 = vmatpush1.msra.mxu0 %v34
    %380 = vmatprep.subr.mxu0 0.0
    %381 = vmatpush1.msra.mxu0 %v35
    %382 = vmatprep.subr.mxu0 0.0
    %383 = vmatpush1.msra.mxu0 %v36
    %384 = vmatprep.subr.mxu0 0.0
    %385 = vmatpush1.msra.mxu0 0.0
    %386 = vmatprep.subr.mxu0 0.0
    %387 = vmatpush1.msra.mxu0 0.0
    %388 = vmatprep.subr.mxu0 0.0
    %389 = vmatpush1.msra.mxu0 0.0
    %390 = vmatprep.subr.mxu0 0.0
    %391 = vmatpush1.msra.mxu0 0.0
    %392 = vmatprep.subr.mxu0 0.0
    %393 = vmatpush1.msra.mxu0 0.0
    %394 = vmatprep.subr.mxu0 0.0
    %395 = vmatpush1.msra.mxu0 0.0
    %396 = vmatprep.subr.mxu0 0.0
    %397 = vmatpush1.msra.mxu0 0.0
    %398 = vmatprep.subr.mxu0 0.0
    %399 = vmatpush1.msra.mxu0 0.0
    %400 = vmatprep.subr.mxu0 0.0
    %401 = vmatpush1.msra.mxu0 0.0
    %402 = vmatprep.subr.mxu0 0.0
    %403 = vmatpush1.msra.mxu0 0.0
    %404 = vmatprep.subr.mxu0 0.0
    %405 = vmatpush1.msra.mxu0 0.0
    %406 = vmatprep.subr.mxu0 0.0
    %407 = vmatpush1.msra.mxu0 0.0
    %408 = vmatprep.subr.mxu0 0.0
    %409 = vmatpush1.msra.mxu0 0.0
    %410 = vmatprep.subr.mxu0 0.0
    %411 = vmatpush1.msra.mxu0 0.0
    %412 = vmatprep.subr.mxu0 0.0
    %413 = vmatpush1.msra.mxu0 0.0
    %414 = vmatprep.subr.mxu0 0.0
    %415 = vmatpush1.msra.mxu0 0.0
    %416 = vmatprep.subr.mxu0 0.0
    %417 = vmatpush1.msra.mxu0 0.0
    %418 = vmatprep.subr.mxu0 0.0
    %419 = vmatpush1.msra.mxu0 0.0
    %420 = vmatprep.subr.mxu0 0.0
    %421 = vmatpush1.msra.mxu0 0.0
    %422 = vmatprep.subr.mxu0 0.0
    %423 = vmatpush1.msra.mxu0 0.0
    %424 = vmatprep.subr.mxu0 0.0
    %425 = vmatpush1.msra.mxu0 0.0
    %426 = vmatprep.subr.mxu0 0.0
    %427 = vmatpush1.msra.mxu0 0.0
    %428 = vmatprep.subr.mxu0 0.0
    %429 = vmatpush1.msra.mxu0 0.0
    %430 = vmatprep.subr.mxu0 0.0
    %431 = vmatpush1.msra.mxu0 0.0
    %432 = vmatprep.subr.mxu0 0.0
    %433 = vmatpush1.msra.mxu0 0.0
    %434 = vmatprep.subr.mxu0 0.0
    %435 = vmatpush1.msra.mxu0 0.0
    %436 = vmatprep.subr.mxu0 0.0
    %437 = vmatpush1.msra.mxu0 0.0
    %438 = vmatprep.subr.mxu0 0.0
    %439 = vmatpush1.msra.mxu0 0.0
    %440 = vmatprep.mubr.f32.mxu0 0.0
    %441 = vmatmul.mubr.f32.gmra.mrb[0].mxu0 %v374
    %v442 = vpop.f32.mrb[0].mxu0
    %v443 = vadd.f32 0.0, %v442
    %v444 = vpop.f32.mrb[0].mxu0
    %445 = vdwg.mxu0
    %v446 = vadd.f32 %v152, %v443
    %v447 = vtanh.pop %v446
    %v448 = vmul.f32 %v447, 0.5
    %v449 = vadd.f32 %v448, 0.5
    %v450 = vmul.f32 %v449, %v364
    %452 = vrot.lane.b32.xlu0 %v447, 64
    %v453 = vpop.permute.xlu0 %452
    %v455 = vmul.f32 %v449, %v453
    %457 = vrot.lane.b32.xlu0 %v455, 32
    %v458 = vpop.permute.xlu0 %457
    %v460 = vadd.f32 %v450, %v458
    %v461 = vtanh.pop %v460
    %463 = vrot.lane.b32.xlu0 %v461, 64
    %v464 = vpop.permute.xlu0 %463
    %v466 = vmul.f32 %v449, %v464
    %468 = vrot.lane.b32.xlu0 %v466, 32
    %v469 = vpop.permute.xlu0 %468
    %v470 = vsel %vm180, %v469, 0
    %472 = vmatprep.subr.mxu0 0.0
    %473 = vmatpush1.msra.mxu0 %v33
    %474 = vmatprep.subr.mxu0 0.0
    %475 = vmatpush1.msra.mxu0 %v34
    %476 = vmatprep.subr.mxu0 0.0
    %477 = vmatpush1.msra.mxu0 %v35
    %478 = vmatprep.subr.mxu0 0.0
    %479 = vmatpush1.msra.mxu0 %v36
    %480 = vmatprep.subr.mxu0 0.0
    %481 = vmatpush1.msra.mxu0 0.0
    %482 = vmatprep.subr.mxu0 0.0
    %483 = vmatpush1.msra.mxu0 0.0
    %484 = vmatprep.subr.mxu0 0.0
    %485 = vmatpush1.msra.mxu0 0.0
    %486 = vmatprep.subr.mxu0 0.0
    %487 = vmatpush1.msra.mxu0 0.0
    %488 = vmatprep.subr.mxu0 0.0
    %489 = vmatpush1.msra.mxu0 0.0
    %490 = vmatprep.subr.mxu0 0.0
    %491 = vmatpush1.msra.mxu0 0.0
    %492 = vmatprep.subr.mxu0 0.0
    %493 = vmatpush1.msra.mxu0 0.0
    %494 = vmatprep.subr.mxu0 0.0
    %495 = vmatpush1.msra.mxu0 0.0
    %496 = vmatprep.subr.mxu0 0.0
    %497 = vmatpush1.msra.mxu0 0.0
    %498 = vmatprep.subr.mxu0 0.0
    %499 = vmatpush1.msra.mxu0 0.0
    %500 = vmatprep.subr.mxu0 0.0
    %501 = vmatpush1.msra.mxu0 0.0
    %502 = vmatprep.subr.mxu0 0.0
    %503 = vmatpush1.msra.mxu0 0.0
    %504 = vmatprep.subr.mxu0 0.0
    %505 = vmatpush1.msra.mxu0 0.0
    %506 = vmatprep.subr.mxu0 0.0
    %507 = vmatpush1.msra.mxu0 0.0
    %508 = vmatprep.subr.mxu0 0.0
    %509 = vmatpush1.msra.mxu0 0.0
    %510 = vmatprep.subr.mxu0 0.0
    %511 = vmatpush1.msra.mxu0 0.0
    %512 = vmatprep.subr.mxu0 0.0
    %513 = vmatpush1.msra.mxu0 0.0
    %514 = vmatprep.subr.mxu0 0.0
    %515 = vmatpush1.msra.mxu0 0.0
    %516 = vmatprep.subr.mxu0 0.0
    %517 = vmatpush1.msra.mxu0 0.0
    %518 = vmatprep.subr.mxu0 0.0
    %519 = vmatpush1.msra.mxu0 0.0
    %520 = vmatprep.subr.mxu0 0.0
    %521 = vmatpush1.msra.mxu0 0.0
    %522 = vmatprep.subr.mxu0 0.0
    %523 = vmatpush1.msra.mxu0 0.0
    %524 = vmatprep.subr.mxu0 0.0
    %525 = vmatpush1.msra.mxu0 0.0
    %526 = vmatprep.subr.mxu0 0.0
    %527 = vmatpush1.msra.mxu0 0.0
    %528 = vmatprep.subr.mxu0 0.0
    %529 = vmatpush1.msra.mxu0 0.0
    %530 = vmatprep.subr.mxu0 0.0
    %531 = vmatpush1.msra.mxu0 0.0
    %532 = vmatprep.subr.mxu0 0.0
    %533 = vmatpush1.msra.mxu0 0.0
    %534 = vmatprep.subr.mxu0 0.0
    %535 = vmatpush1.msra.mxu0 0.0
    %536 = vmatprep.mubr.f32.mxu0 0.0
    %537 = vmatmul.mubr.f32.gmra.mrb[0].mxu0 %v470
    %v538 = vpop.f32.mrb[0].mxu0
    %v539 = vadd.f32 0.0, %v538
    %v540 = vpop.f32.mrb[0].mxu0
    %541 = vdwg.mxu0
    %v542 = vadd.f32 %v157, %v539
    %v543 = vtanh.pop %v542
    %v544 = vmul.f32 %v543, 0.5
    %v545 = vadd.f32 %v544, 0.5
    %v546 = vmul.f32 %v545, %v460
    %548 = vrot.lane.b32.xlu0 %v543, 64
    %v549 = vpop.permute.xlu0 %548
    %v551 = vmul.f32 %v545, %v549
    %553 = vrot.lane.b32.xlu0 %v551, 32
    %v554 = vpop.permute.xlu0 %553
    %v556 = vadd.f32 %v546, %v554
    %v557 = vtanh.pop %v556
    %559 = vrot.lane.b32.xlu0 %v557, 64
    %v560 = vpop.permute.xlu0 %559
    %v562 = vmul.f32 %v545, %v560
    %564 = vrot.lane.b32.xlu0 %v562, 32
    %v565 = vpop.permute.xlu0 %564
    %v566 = vsel %vm180, %v565, 0
    %568 = vmatprep.subr.mxu0 0.0
    %569 = vmatpush1.msra.mxu0 %v33
    %570 = vmatprep.subr.mxu0 0.0
    %571 = vmatpush1.msra.mxu0 %v34
    %572 = vmatprep.subr.mxu0 0.0
    %573 = vmatpush1.msra.mxu0 %v35
    %574 = vmatprep.subr.mxu0 0.0
    %575 = vmatpush1.msra.mxu0 %v36
    %576 = vmatprep.subr.mxu0 0.0
    %577 = vmatpush1.msra.mxu0 0.0
    %578 = vmatprep.subr.mxu0 0.0
    %579 = vmatpush1.msra.mxu0 0.0
    %580 = vmatprep.subr.mxu0 0.0
    %581 = vmatpush1.msra.mxu0 0.0
    %582 = vmatprep.subr.mxu0 0.0
    %583 = vmatpush1.msra.mxu0 0.0
    %584 = vmatprep.subr.mxu0 0.0
    %585 = vmatpush1.msra.mxu0 0.0
    %586 = vmatprep.subr.mxu0 0.0
    %587 = vmatpush1.msra.mxu0 0.0
    %588 = vmatprep.subr.mxu0 0.0
    %589 = vmatpush1.msra.mxu0 0.0
    %590 = vmatprep.subr.mxu0 0.0
    %591 = vmatpush1.msra.mxu0 0.0
    %592 = vmatprep.subr.mxu0 0.0
    %593 = vmatpush1.msra.mxu0 0.0
    %594 = vmatprep.subr.mxu0 0.0
    %595 = vmatpush1.msra.mxu0 0.0
    %596 = vmatprep.subr.mxu0 0.0
    %597 = vmatpush1.msra.mxu0 0.0
    %598 = vmatprep.subr.mxu0 0.0
    %599 = vmatpush1.msra.mxu0 0.0
    %600 = vmatprep.subr.mxu0 0.0
    %601 = vmatpush1.msra.mxu0 0.0
    %602 = vmatprep.subr.mxu0 0.0
    %603 = vmatpush1.msra.mxu0 0.0
    %604 = vmatprep.subr.mxu0 0.0
    %605 = vmatpush1.msra.mxu0 0.0
    %606 = vmatprep.subr.mxu0 0.0
    %607 = vmatpush1.msra.mxu0 0.0
    %608 = vmatprep.subr.mxu0 0.0
    %609 = vmatpush1.msra.mxu0 0.0
    %610 = vmatprep.subr.mxu0 0.0
    %611 = vmatpush1.msra.mxu0 0.0
    %612 = vmatprep.subr.mxu0 0.0
    %613 = vmatpush1.msra.mxu0 0.0
    %614 = vmatprep.subr.mxu0 0.0
    %615 = vmatpush1.msra.mxu0 0.0
    %616 = vmatprep.subr.mxu0 0.0
    %617 = vmatpush1.msra.mxu0 0.0
    %618 = vmatprep.subr.mxu0 0.0
    %619 = vmatpush1.msra.mxu0 0.0
    %620 = vmatprep.subr.mxu0 0.0
    %621 = vmatpush1.msra.mxu0 0.0
    %622 = vmatprep.subr.mxu0 0.0
    %623 = vmatpush1.msra.mxu0 0.0
    %624 = vmatprep.subr.mxu0 0.0
    %625 = vmatpush1.msra.mxu0 0.0
    %626 = vmatprep.subr.mxu0 0.0
    %627 = vmatpush1.msra.mxu0 0.0
    %628 = vmatprep.subr.mxu0 0.0
    %629 = vmatpush1.msra.mxu0 0.0
    %630 = vmatprep.subr.mxu0 0.0
    %631 = vmatpush1.msra.mxu0 0.0
    %632 = vmatprep.mubr.f32.mxu0 0.0
    %633 = vmatmul.mubr.f32.gmra.mrb[0].mxu0 %v566
    %v634 = vpop.f32.mrb[0].mxu0
    %v635 = vadd.f32 0.0, %v634
    %v636 = vpop.f32.mrb[0].mxu0
    %637 = vdwg.mxu0
    %v638 = vadd.f32 %v162, %v635
    %v639 = vtanh.pop %v638
    %v640 = vmul.f32 %v639, 0.5
    %v641 = vadd.f32 %v640, 0.5
    %v642 = vmul.f32 %v641, %v556
    %644 = vrot.lane.b32.xlu0 %v639, 64
    %v645 = vpop.permute.xlu0 %644
    %v647 = vmul.f32 %v641, %v645
    %649 = vrot.lane.b32.xlu0 %v647, 32
    %v650 = vpop.permute.xlu0 %649
    %v652 = vadd.f32 %v642, %v650
    %v653 = vtanh.pop %v652
    %655 = vrot.lane.b32.xlu0 %v653, 64
    %v656 = vpop.permute.xlu0 %655
    %v658 = vmul.f32 %v641, %v656
    %660 = vrot.lane.b32.xlu0 %v658, 32
    %v661 = vpop.permute.xlu0 %660
    %v662 = vsel %vm180, %v661, 0
    %664 = vmatprep.subr.mxu0 0.0
    %665 = vmatpush1.msra.mxu0 %v33
    %666 = vmatprep.subr.mxu0 0.0
    %667 = vmatpush1.msra.mxu0 %v34
    %668 = vmatprep.subr.mxu0 0.0
    %669 = vmatpush1.msra.mxu0 %v35
    %670 = vmatprep.subr.mxu0 0.0
    %671 = vmatpush1.msra.mxu0 %v36
    %672 = vmatprep.subr.mxu0 0.0
    %673 = vmatpush1.msra.mxu0 0.0
    %674 = vmatprep.subr.mxu0 0.0
    %675 = vmatpush1.msra.mxu0 0.0
    %676 = vmatprep.subr.mxu0 0.0
    %677 = vmatpush1.msra.mxu0 0.0
    %678 = vmatprep.subr.mxu0 0.0
    %679 = vmatpush1.msra.mxu0 0.0
    %680 = vmatprep.subr.mxu0 0.0
    %681 = vmatpush1.msra.mxu0 0.0
    %682 = vmatprep.subr.mxu0 0.0
    %683 = vmatpush1.msra.mxu0 0.0
    %684 = vmatprep.subr.mxu0 0.0
    %685 = vmatpush1.msra.mxu0 0.0
    %686 = vmatprep.subr.mxu0 0.0
    %687 = vmatpush1.msra.mxu0 0.0
    %688 = vmatprep.subr.mxu0 0.0
    %689 = vmatpush1.msra.mxu0 0.0
    %690 = vmatprep.subr.mxu0 0.0
    %691 = vmatpush1.msra.mxu0 0.0
    %692 = vmatprep.subr.mxu0 0.0
    %693 = vmatpush1.msra.mxu0 0.0
    %694 = vmatprep.subr.mxu0 0.0
    %695 = vmatpush1.msra.mxu0 0.0
    %696 = vmatprep.subr.mxu0 0.0
    %697 = vmatpush1.msra.mxu0 0.0
    %698 = vmatprep.subr.mxu0 0.0
    %699 = vmatpush1.msra.mxu0 0.0
    %700 = vmatprep.subr.mxu0 0.0
    %701 = vmatpush1.msra.mxu0 0.0
    %702 = vmatprep.subr.mxu0 0.0
    %703 = vmatpush1.msra.mxu0 0.0
    %704 = vmatprep.subr.mxu0 0.0
    %705 = vmatpush1.msra.mxu0 0.0
    %706 = vmatprep.subr.mxu0 0.0
    %707 = vmatpush1.msra.mxu0 0.0
    %708 = vmatprep.subr.mxu0 0.0
    %709 = vmatpush1.msra.mxu0 0.0
    %710 = vmatprep.subr.mxu0 0.0
    %711 = vmatpush1.msra.mxu0 0.0
    %712 = vmatprep.subr.mxu0 0.0
    %713 = vmatpush1.msra.mxu0 0.0
    %714 = vmatprep.subr.mxu0 0.0
    %715 = vmatpush1.msra.mxu0 0.0
    %716 = vmatprep.subr.mxu0 0.0
    %717 = vmatpush1.msra.mxu0 0.0
    %718 = vmatprep.subr.mxu0 0.0
    %719 = vmatpush1.msra.mxu0 0.0
    %720 = vmatprep.subr.mxu0 0.0
    %721 = vmatpush1.msra.mxu0 0.0
    %722 = vmatprep.subr.mxu0 0.0
    %723 = vmatpush1.msra.mxu0 0.0
    %724 = vmatprep.subr.mxu0 0.0
    %725 = vmatpush1.msra.mxu0 0.0
    %726 = vmatprep.subr.mxu0 0.0
    %727 = vmatpush1.msra.mxu0 0.0
    %728 = vmatprep.mubr.f32.mxu0 0.0
    %729 = vmatmul.mubr.f32.gmra.mrb[0].mxu0 %v662
    %v730 = vpop.f32.mrb[0].mxu0
    %v731 = vadd.f32 0.0, %v730
    %v732 = vpop.f32.mrb[0].mxu0
    %733 = vdwg.mxu0
    %v734 = vadd.f32 %v167, %v731
    %v735 = vtanh.pop %v734
    %v736 = vmul.f32 %v735, 0.5
    %v737 = vadd.f32 %v736, 0.5
    %v738 = vmul.f32 %v737, %v652
    %740 = vrot.lane.b32.xlu0 %v735, 64
    %v741 = vpop.permute.xlu0 %740
    %v743 = vmul.f32 %v737, %v741
    %745 = vrot.lane.b32.xlu0 %v743, 32
    %v746 = vpop.permute.xlu0 %745
    %v748 = vadd.f32 %v738, %v746
    %v749 = vtanh.pop %v748
    %751 = vrot.lane.b32.xlu0 %v749, 64
    %v752 = vpop.permute.xlu0 %751
    %v754 = vmul.f32 %v737, %v752
    %756 = vrot.lane.b32.xlu0 %v754, 32
    %v757 = vpop.permute.xlu0 %756
    %v758 = vsel %vm180, %v757, 0
    %760 = vmatprep.subr.mxu0 0.0
    %761 = vmatpush1.msra.mxu0 %v33
    %762 = vmatprep.subr.mxu0 0.0
    %763 = vmatpush1.msra.mxu0 %v34
    %764 = vmatprep.subr.mxu0 0.0
    %765 = vmatpush1.msra.mxu0 %v35
    %766 = vmatprep.subr.mxu0 0.0
    %767 = vmatpush1.msra.mxu0 %v36
    %768 = vmatprep.subr.mxu0 0.0
    %769 = vmatpush1.msra.mxu0 0.0
    %770 = vmatprep.subr.mxu0 0.0
    %771 = vmatpush1.msra.mxu0 0.0
    %772 = vmatprep.subr.mxu0 0.0
    %773 = vmatpush1.msra.mxu0 0.0
    %774 = vmatprep.subr.mxu0 0.0
    %775 = vmatpush1.msra.mxu0 0.0
    %776 = vmatprep.subr.mxu0 0.0
    %777 = vmatpush1.msra.mxu0 0.0
    %778 = vmatprep.subr.mxu0 0.0
    %779 = vmatpush1.msra.mxu0 0.0
    %780 = vmatprep.subr.mxu0 0.0
    %781 = vmatpush1.msra.mxu0 0.0
    %782 = vmatprep.subr.mxu0 0.0
    %783 = vmatpush1.msra.mxu0 0.0
    %784 = vmatprep.subr.mxu0 0.0
    %785 = vmatpush1.msra.mxu0 0.0
    %786 = vmatprep.subr.mxu0 0.0
    %787 = vmatpush1.msra.mxu0 0.0
    %788 = vmatprep.subr.mxu0 0.0
    %789 = vmatpush1.msra.mxu0 0.0
    %790 = vmatprep.subr.mxu0 0.0
    %791 = vmatpush1.msra.mxu0 0.0
    %792 = vmatprep.subr.mxu0 0.0
    %793 = vmatpush1.msra.mxu0 0.0
    %794 = vmatprep.subr.mxu0 0.0
    %795 = vmatpush1.msra.mxu0 0.0
    %796 = vmatprep.subr.mxu0 0.0
    %797 = vmatpush1.msra.mxu0 0.0
    %798 = vmatprep.subr.mxu0 0.0
    %799 = vmatpush1.msra.mxu0 0.0
    %800 = vmatprep.subr.mxu0 0.0
    %801 = vmatpush1.msra.mxu0 0.0
    %802 = vmatprep.subr.mxu0 0.0
    %803 = vmatpush1.msra.mxu0 0.0
    %804 = vmatprep.subr.mxu0 0.0
    %805 = vmatpush1.msra.mxu0 0.0
    %806 = vmatprep.subr.mxu0 0.0
    %807 = vmatpush1.msra.mxu0 0.0
    %808 = vmatprep.subr.mxu0 0.0
    %809 = vmatpush1.msra.mxu0 0.0
    %810 = vmatprep.subr.mxu0 0.0
    %811 = vmatpush1.msra.mxu0 0.0
    %812 = vmatprep.subr.mxu0 0.0
    %813 = vmatpush1.msra.mxu0 0.0
    %814 = vmatprep.subr.mxu0 0.0
    %815 = vmatpush1.msra.mxu0 0.0
    %816 = vmatprep.subr.mxu0 0.0
    %817 = vmatpush1.msra.mxu0 0.0
    %818 = vmatprep.subr.mxu0 0.0
    %819 = vmatpush1.msra.mxu0 0.0
    %820 = vmatprep.subr.mxu0 0.0
    %821 = vmatpush1.msra.mxu0 0.0
    %822 = vmatprep.subr.mxu0 0.0
    %823 = vmatpush1.msra.mxu0 0.0
    %824 = vmatprep.mubr.f32.mxu0 0.0
    %825 = vmatmul.mubr.f32.gmra.mrb[0].mxu0 %v758
    %v826 = vpop.f32.mrb[0].mxu0
    %v827 = vadd.f32 0.0, %v826
    %v828 = vpop.f32.mrb[0].mxu0
    %829 = vdwg.mxu0
    %v830 = vadd.f32 %v172, %v827
    %v831 = vtanh.pop %v830
    %v832 = vmul.f32 %v831, 0.5
    %v833 = vadd.f32 %v832, 0.5
    %v834 = vmul.f32 %v833, %v748
    %836 = vrot.lane.b32.xlu0 %v831, 64
    %v837 = vpop.permute.xlu0 %836
    %v839 = vmul.f32 %v833, %v837
    %841 = vrot.lane.b32.xlu0 %v839, 32
    %v842 = vpop.permute.xlu0 %841
    %v844 = vadd.f32 %v834, %v842
    %v845 = vtanh.pop %v844
    %847 = vrot.lane.b32.xlu0 %v845, 64
    %v848 = vpop.permute.xlu0 %847
    %v850 = vmul.f32 %v833, %v848
    %852 = vrot.lane.b32.xlu0 %v850, 32
    %v853 = vpop.permute.xlu0 %852
    %v854 = vsel %vm180, %v853, 0
    %856 = vmatprep.subr.mxu0 0.0
    %857 = vmatpush1.msra.mxu0 %v33
    %858 = vmatprep.subr.mxu0 0.0
    %859 = vmatpush1.msra.mxu0 %v34
    %860 = vmatprep.subr.mxu0 0.0
    %861 = vmatpush1.msra.mxu0 %v35
    %862 = vmatprep.subr.mxu0 0.0
    %863 = vmatpush1.msra.mxu0 %v36
    %864 = vmatprep.subr.mxu0 0.0
    %865 = vmatpush1.msra.mxu0 0.0
    %866 = vmatprep.subr.mxu0 0.0
    %867 = vmatpush1.msra.mxu0 0.0
    %868 = vmatprep.subr.mxu0 0.0
    %869 = vmatpush1.msra.mxu0 0.0
    %870 = vmatprep.subr.mxu0 0.0
    %871 = vmatpush1.msra.mxu0 0.0
    %872 = vmatprep.subr.mxu0 0.0
    %873 = vmatpush1.msra.mxu0 0.0
    %874 = vmatprep.subr.mxu0 0.0
    %875 = vmatpush1.msra.mxu0 0.0
    %876 = vmatprep.subr.mxu0 0.0
    %877 = vmatpush1.msra.mxu0 0.0
    %878 = vmatprep.subr.mxu0 0.0
    %879 = vmatpush1.msra.mxu0 0.0
    %880 = vmatprep.subr.mxu0 0.0
    %881 = vmatpush1.msra.mxu0 0.0
    %882 = vmatprep.subr.mxu0 0.0
    %883 = vmatpush1.msra.mxu0 0.0
    %884 = vmatprep.subr.mxu0 0.0
    %885 = vmatpush1.msra.mxu0 0.0
    %886 = vmatprep.subr.mxu0 0.0
    %887 = vmatpush1.msra.mxu0 0.0
    %888 = vmatprep.subr.mxu0 0.0
    %889 = vmatpush1.msra.mxu0 0.0
    %890 = vmatprep.subr.mxu0 0.0
    %891 = vmatpush1.msra.mxu0 0.0
    %892 = vmatprep.subr.mxu0 0.0
    %893 = vmatpush1.msra.mxu0 0.0
    %894 = vmatprep.subr.mxu0 0.0
    %895 = vmatpush1.msra.mxu0 0.0
    %896 = vmatprep.subr.mxu0 0.0
    %897 = vmatpush1.msra.mxu0 0.0
    %898 = vmatprep.subr.mxu0 0.0
    %899 = vmatpush1.msra.mxu0 0.0
    %900 = vmatprep.subr.mxu0 0.0
    %901 = vmatpush1.msra.mxu0 0.0
    %902 = vmatprep.subr.mxu0 0.0
    %903 = vmatpush1.msra.mxu0 0.0
    %904 = vmatprep.subr.mxu0 0.0
    %905 = vmatpush1.msra.mxu0 0.0
    %906 = vmatprep.subr.mxu0 0.0
    %907 = vmatpush1.msra.mxu0 0.0
    %908 = vmatprep.subr.mxu0 0.0
    %909 = vmatpush1.msra.mxu0 0.0
    %910 = vmatprep.subr.mxu0 0.0
    %911 = vmatpush1.msra.mxu0 0.0
    %912 = vmatprep.subr.mxu0 0.0
    %913 = vmatpush1.msra.mxu0 0.0
    %914 = vmatprep.subr.mxu0 0.0
    %915 = vmatpush1.msra.mxu0 0.0
    %916 = vmatprep.subr.mxu0 0.0
    %917 = vmatpush1.msra.mxu0 0.0
    %918 = vmatprep.subr.mxu0 0.0
    %919 = vmatpush1.msra.mxu0 0.0
    %920 = vmatprep.mubr.f32.mxu0 0.0
    %921 = vmatmul.mubr.f32.gmra.mrb[0].mxu0 %v854
    %v922 = vpop.f32.mrb[0].mxu0
    %v923 = vadd.f32 0.0, %v922
    %v924 = vpop.f32.mrb[0].mxu0
    %925 = vdwg.mxu0
    %v926 = vadd.f32 %v177, %v923
    %v927 = vtanh.pop %v926
    %v928 = vmul.f32 %v927, 0.5
    %v929 = vadd.f32 %v928, 0.5
    %v930 = vmul.f32 %v929, %v844
    %932 = vrot.lane.b32.xlu0 %v927, 64
    %v933 = vpop.permute.xlu0 %932
    %v935 = vmul.f32 %v929, %v933
    %937 = vrot.lane.b32.xlu0 %v935, 32
    %v938 = vpop.permute.xlu0 %937
    %v940 = vadd.f32 %v930, %v938
    %v941 = vtanh.pop %v940
    %943 = vrot.lane.b32.xlu0 %v941, 64
    %v944 = vpop.permute.xlu0 %943
    %v946 = vmul.f32 %v929, %v944
    %v947 = vld [vmem:[#allocation2 + $0x68] sm:$0xff]
    %v948 = vld [vmem:[#allocation2 + $0x70] sm:$0xff]
    %v949 = vld [vmem:[#allocation2 + $0x78] sm:$0xff]
    %v950 = vld [vmem:[#allocation2 + $0x80] sm:$0xff]
    %v951 = vld [vmem:[#allocation2 + $0x88] sm:$0xff]
    %v952 = vld [vmem:[#allocation2 + $0x90] sm:$0xff]
    %v953 = vld [vmem:[#allocation2 + $0x98] sm:$0xff]
    %v954 = vld [vmem:[#allocation2 + $0xa0] sm:$0xff]
    %v955 = vld [vmem:[#allocation2 + $0xa8] sm:$0xff]
    %956 = vmatprep.subr.mxu0 0.0
    %957 = vmatpush1.msra.mxu0 %v947
    %958 = vmatprep.subr.mxu0 0.0
    %959 = vmatpush1.msra.mxu0 %v948
    %960 = vmatprep.subr.mxu0 0.0
    %961 = vmatpush1.msra.mxu0 %v949
    %962 = vmatprep.subr.mxu0 0.0
    %963 = vmatpush1.msra.mxu0 %v950
    %964 = vmatprep.subr.mxu0 0.0
    %965 = vmatpush1.msra.mxu0 %v951
    %966 = vmatprep.subr.mxu0 0.0
    %967 = vmatpush1.msra.mxu0 %v952
    %968 = vmatprep.subr.mxu0 0.0
    %969 = vmatpush1.msra.mxu0 %v953
    %970 = vmatprep.subr.mxu0 0.0
    %971 = vmatpush1.msra.mxu0 %v954
    %972 = vmatprep.subr.mxu0 0.0
    %973 = vmatpush1.msra.mxu0 0.0
    %974 = vmatprep.subr.mxu0 0.0
    %975 = vmatpush1.msra.mxu0 0.0
    %976 = vmatprep.subr.mxu0 0.0
    %977 = vmatpush1.msra.mxu0 0.0
    %978 = vmatprep.subr.mxu0 0.0
    %979 = vmatpush1.msra.mxu0 0.0
    %980 = vmatprep.subr.mxu0 0.0
    %981 = vmatpush1.msra.mxu0 0.0
    %982 = vmatprep.subr.mxu0 0.0
    %983 = vmatpush1.msra.mxu0 0.0
    %984 = vmatprep.subr.mxu0 0.0
    %985 = vmatpush1.msra.mxu0 0.0
    %986 = vmatprep.subr.mxu0 0.0
    %987 = vmatpush1.msra.mxu0 0.0
    %988 = vmatprep.subr.mxu0 0.0
    %989 = vmatpush1.msra.mxu0 0.0
    %990 = vmatprep.subr.mxu0 0.0
    %991 = vmatpush1.msra.mxu0 0.0
    %992 = vmatprep.subr.mxu0 0.0
    %993 = vmatpush1.msra.mxu0 0.0
    %994 = vmatprep.subr.mxu0 0.0
    %995 = vmatpush1.msra.mxu0 0.0
    %996 = vmatprep.subr.mxu0 0.0
    %997 = vmatpush1.msra.mxu0 0.0
    %998 = vmatprep.subr.mxu0 0.0
    %999 = vmatpush1.msra.mxu0 0.0
    %1000 = vmatprep.subr.mxu0 0.0
    %1001 = vmatpush1.msra.mxu0 0.0
    %1002 = vmatprep.subr.mxu0 0.0
    %1003 = vmatpush1.msra.mxu0 0.0
    %1004 = vmatprep.subr.mxu0 0.0
    %1005 = vmatpush1.msra.mxu0 0.0
    %1006 = vmatprep.subr.mxu0 0.0
    %1007 = vmatpush1.msra.mxu0 0.0
    %1008 = vmatprep.subr.mxu0 0.0
    %1009 = vmatpush1.msra.mxu0 0.0
    %1010 = vmatprep.subr.mxu0 0.0
    %1011 = vmatpush1.msra.mxu0 0.0
    %1012 = vmatprep.subr.mxu0 0.0
    %1013 = vmatpush1.msra.mxu0 0.0
    %1014 = vmatprep.subr.mxu0 0.0
    %1015 = vmatpush1.msra.mxu0 0.0
    %1016 = vmatprep.subr.mxu0 0.0
    %1017 = vmatpush1.msra.mxu0 0.0
    %1018 = vmatprep.subr.mxu0 0.0
    %1019 = vmatpush1.msra.mxu0 0.0
    %1020 = vmatprep.mubr.f32.mxu0 0.0
    %1021 = vmatmul.mubr.f32.gmra.mrb[0].mxu0 %v73
    %v1022 = vpop.f32.mrb[0].mxu0
    %v1023 = vadd.f32 %v955, %v1022
    %v1024 = vpop.f32.mrb[0].mxu0
    %1025 = vdwg.mxu0
    %v1026 = vtanh.pop %v1023
    %v1027 = vmul.f32 %v1026, 0.5
    %v1028 = vadd.f32 %v1027, 0.5
    %1030 = vrot.lane.b32.xlu0 %v1026, 64
    %v1031 = vpop.permute.xlu0 %1030
    %v1033 = vmul.f32 %v1028, %v1031
    %v1034 = vtanh.pop %v1033
    %1036 = vrot.lane.b32.xlu0 %v1034, 96
    %v1037 = vpop.permute.xlu0 %1036
    %v1039 = vmul.f32 %v1028, %v1037
    %1041 = vrot.lane.b32.xlu0 %v946, 32
    %v1042 = vpop.permute.xlu0 %1041
    %1045 = vrot.lane.b32.xlu0 %v1039, 64
    %v1046 = vpop.permute.xlu0 %1045
    %v1048 = vsel %vm180, %v1042, %v1046
    %v1049 = vld [vmem:[#allocation2 + $0xb0] sm:$0xff]
    %v1050 = vld [vmem:[#allocation2 + $0xb8] sm:$0xff]
    %v1051 = vld [vmem:[#allocation2 + $0xc0] sm:$0xff]
    %v1052 = vld [vmem:[#allocation2 + $0xc8] sm:$0xff]
    %v1053 = vld [vmem:[#allocation2 + $0xd0] sm:$0xff]
    %v1054 = vld [vmem:[#allocation2 + $0xd8] sm:$0xff]
    %v1055 = vld [vmem:[#allocation2 + $0xe0] sm:$0xff]
    %v1056 = vld [vmem:[#allocation2 + $0xe8] sm:$0xff]
    %v1057 = vld [vmem:[#allocation2 + $0xf0] sm:$0xff]
    %v1058 = vld [vmem:[#allocation2 + $0xf8] sm:$0xff]
    %v1059 = vld [vmem:[#allocation2 + $0x100] sm:$0xff]
    %v1060 = vld [vmem:[#allocation2 + $0x108] sm:$0xff]
    %v1061 = vld [vmem:[#allocation2 + $0x110] sm:$0xff]
    %v1062 = vld [vmem:[#allocation2 + $0x118] sm:$0xff]
    %v1063 = vld [vmem:[#allocation2 + $0x120] sm:$0xff]
    %v1064 = vld [vmem:[#allocation2 + $0x128] sm:$0xff]
    %v1065 = vld [vmem:[#allocation2 + $0x130] sm:$0xff]
    %v1066 = vld [vmem:[#allocation2 + $0x138] sm:$0xff]
    %v1067 = vld [vmem:[#allocation2 + $0x140] sm:$0xff]
    %v1068 = vld [vmem:[#allocation2 + $0x148] sm:$0xff]
    %v1069 = vld [vmem:[#allocation2 + $0x150] sm:$0xff]
    %v1070 = vld [vmem:[#allocation2 + $0x158] sm:$0xff]
    %v1071 = vld [vmem:[#allocation2 + $0x160] sm:$0xff]
    %v1072 = vld [vmem:[#allocation2 + $0x168] sm:$0xff]
    %v1073 = vld [vmem:[#allocation2 + $0x170] sm:$0xff]
    %v1074 = vld [vmem:[#allocation2 + $0x178] sm:$0xff]
    %v1075 = vld [vmem:[#allocation2 + $0x180] sm:$0xff]
    %v1076 = vld [vmem:[#allocation2 + $0x188] sm:$0xff]
    %v1077 = vld [vmem:[#allocation2 + $0x190] sm:$0xff]
    %v1078 = vld [vmem:[#allocation2 + $0x198] sm:$0xff]
    %v1079 = vld [vmem:[#allocation2 + $0x1a0] sm:$0xff]
    %v1080 = vld [vmem:[#allocation2 + $0x1a8] sm:$0xff]
    %v1081 = vld [vmem:[#allocation2 + $0x1b0] sm:$0xff]
    %v1082 = vld [vmem:[#allocation2 + $0x1b8] sm:$0xff]
    %v1083 = vld [vmem:[#allocation2 + $0x1c0] sm:$0xff]
    %v1084 = vld [vmem:[#allocation2 + $0x1c8] sm:$0xff]
    %v1085 = vld [vmem:[#allocation2 + $0x1d0] sm:$0xff]
    %v1086 = vld [vmem:[#allocation2 + $0x1d8] sm:$0xff]
    %v1087 = vld [vmem:[#allocation2 + $0x1e0] sm:$0xff]
    %v1088 = vld [vmem:[#allocation2 + $0x1e8] sm:$0xff]
    %v1089 = vld [vmem:[#allocation2 + $0x1f0] sm:$0xff]
    %v1090 = vld [vmem:[#allocation2 + $0x1f8] sm:$0xff]
    %v1091 = vld [vmem:[#allocation2 + $0x200] sm:$0xff]
    %v1092 = vld [vmem:[#allocation2 + $0x208] sm:$0xff]
    %v1093 = vld [vmem:[#allocation2 + $0x210] sm:$0xff]
    %v1094 = vld [vmem:[#allocation2 + $0x218] sm:$0xff]
    %v1095 = vld [vmem:[#allocation2 + $0x220] sm:$0xff]
    %v1096 = vld [vmem:[#allocation2 + $0x228] sm:$0xff]
    %v1097 = vld [vmem:[#allocation2 + $0x230] sm:$0xff]
    %v1098 = vld [vmem:[#allocation2 + $0x238] sm:$0xff]
    %v1099 = vld [vmem:[#allocation2 + $0x240] sm:$0xff]
    %v1100 = vld [vmem:[#allocation2 + $0x248] sm:$0xff]
    %v1101 = vld [vmem:[#allocation2 + $0x250] sm:$0xff]
    %v1102 = vld [vmem:[#allocation2 + $0x258] sm:$0xff]
    %v1103 = vld [vmem:[#allocation2 + $0x260] sm:$0xff]
    %v1104 = vld [vmem:[#allocation2 + $0x268] sm:$0xff]
    %v1105 = vld [vmem:[#allocation2 + $0x270] sm:$0xff]
    %v1106 = vld [vmem:[#allocation2 + $0x278] sm:$0xff]
    %v1107 = vld [vmem:[#allocation2 + $0x280] sm:$0xff]
    %v1108 = vld [vmem:[#allocation2 + $0x288] sm:$0xff]
    %v1110 = vsel %vm50, %v1048, 0
    %1112 = vmatprep.subr.mxu0 0.0
    %1113 = vmatpush1.msra.mxu0 %v1049
    %1114 = vmatprep.subr.mxu0 0.0
    %1115 = vmatpush1.msra.mxu0 %v1050
    %1116 = vmatprep.subr.mxu0 0.0
    %1117 = vmatpush1.msra.mxu0 %v1051
    %1118 = vmatprep.subr.mxu0 0.0
    %1119 = vmatpush1.msra.mxu0 %v1052
    %1120 = vmatprep.subr.mxu0 0.0
    %1121 = vmatpush1.msra.mxu0 %v1053
    %1122 = vmatprep.subr.mxu0 0.0
    %1123 = vmatpush1.msra.mxu0 %v1054
    %1124 = vmatprep.subr.mxu0 0.0
    %1125 = vmatpush1.msra.mxu0 %v1055
    %1126 = vmatprep.subr.mxu0 0.0
    %1127 = vmatpush1.msra.mxu0 %v1056
    %1128 = vmatprep.subr.mxu0 0.0
    %1129 = vmatpush1.msra.mxu0 0.0
    %1130 = vmatprep.subr.mxu0 0.0
    %1131 = vmatpush1.msra.mxu0 0.0
    %1132 = vmatprep.subr.mxu0 0.0
    %1133 = vmatpush1.msra.mxu0 0.0
    %1134 = vmatprep.subr.mxu0 0.0
    %1135 = vmatpush1.msra.mxu0 0.0
    %1136 = vmatprep.subr.mxu0 0.0
    %1137 = vmatpush1.msra.mxu0 0.0
    %1138 = vmatprep.subr.mxu0 0.0
    %1139 = vmatpush1.msra.mxu0 0.0
    %1140 = vmatprep.subr.mxu0 0.0
    %1141 = vmatpush1.msra.mxu0 0.0
    %1142 = vmatprep.subr.mxu0 0.0
    %1143 = vmatpush1.msra.mxu0 0.0
    %1144 = vmatprep.subr.mxu0 0.0
    %1145 = vmatpush1.msra.mxu0 0.0
    %1146 = vmatprep.subr.mxu0 0.0
    %1147 = vmatpush1.msra.mxu0 0.0
    %1148 = vmatprep.subr.mxu0 0.0
    %1149 = vmatpush1.msra.mxu0 0.0
    %1150 = vmatprep.subr.mxu0 0.0
    %1151 = vmatpush1.msra.mxu0 0.0
    %1152 = vmatprep.subr.mxu0 0.0
    %1153 = vmatpush1.msra.mxu0 0.0
    %1154 = vmatprep.subr.mxu0 0.0
    %1155 = vmatpush1.msra.mxu0 0.0
    %1156 = vmatprep.subr.mxu0 0.0
    %1157 = vmatpush1.msra.mxu0 0.0
    %1158 = vmatprep.subr.mxu0 0.0
    %1159 = vmatpush1.msra.mxu0 0.0
    %1160 = vmatprep.subr.mxu0 0.0
    %1161 = vmatpush1.msra.mxu0 0.0
    %1162 = vmatprep.subr.mxu0 0.0
    %1163 = vmatpush1.msra.mxu0 0.0
    %1164 = vmatprep.subr.mxu0 0.0
    %1165 = vmatpush1.msra.mxu0 0.0
    %1166 = vmatprep.subr.mxu0 0.0
    %1167 = vmatpush1.msra.mxu0 0.0
    %1168 = vmatprep.subr.mxu0 0.0
    %1169 = vmatpush1.msra.mxu0 0.0
    %1170 = vmatprep.subr.mxu0 0.0
    %1171 = vmatpush1.msra.mxu0 0.0
    %1172 = vmatprep.subr.mxu0 0.0
    %1173 = vmatpush1.msra.mxu0 0.0
    %1174 = vmatprep.subr.mxu0 0.0
    %1175 = vmatpush1.msra.mxu0 0.0
    %1176 = vmatprep.mubr.f32.mxu0 0.0
    %1177 = vmatmul.mubr.f32.gmra.mrb[0].mxu0 %v1110
    %v1178 = vpop.f32.mrb[0].mxu0
    %v1179 = vadd.f32 %v1057, %v1178
    %v1180 = vpop.f32.mrb[0].mxu0
    %1181 = vdwg.mxu0
    %v1182 = vmax.f32 %v1179, 0.0
    %1183 = vmatprep.subr.mxu0 0.0
    %1184 = vmatpush1.msra.mxu0 %v1058
    %1185 = vmatprep.subr.mxu0 0.0
    %1186 = vmatpush1.msra.mxu0 %v1059
    %1187 = vmatprep.subr.mxu0 0.0
    %1188 = vmatpush1.msra.mxu0 %v1060
    %1189 = vmatprep.subr.mxu0 0.0
    %1190 = vmatpush1.msra.mxu0 %v1061
    %1191 = vmatprep.subr.mxu0 0.0
    %1192 = vmatpush1.msra.mxu0 %v1062
    %1193 = vmatprep.subr.mxu0 0.0
    %1194 = vmatpush1.msra.mxu0 %v1063
    %1195 = vmatprep.subr.mxu0 0.0
    %1196 = vmatpush1.msra.mxu0 %v1064
    %1197 = vmatprep.subr.mxu0 0.0
    %1198 = vmatpush1.msra.mxu0 %v1065
    %1199 = vmatprep.subr.mxu0 0.0
    %1200 = vmatpush1.msra.mxu0 %v1066
    %1201 = vmatprep.subr.mxu0 0.0
    %1202 = vmatpush1.msra.mxu0 %v1067
    %1203 = vmatprep.subr.mxu0 0.0
    %1204 = vmatpush1.msra.mxu0 %v1068
    %1205 = vmatprep.subr.mxu0 0.0
    %1206 = vmatpush1.msra.mxu0 %v1069
    %1207 = vmatprep.subr.mxu0 0.0
    %1208 = vmatpush1.msra.mxu0 %v1070
    %1209 = vmatprep.subr.mxu0 0.0
    %1210 = vmatpush1.msra.mxu0 %v1071
    %1211 = vmatprep.subr.mxu0 0.0
    %1212 = vmatpush1.msra.mxu0 %v1072
    %1213 = vmatprep.subr.mxu0 0.0
    %1214 = vmatpush1.msra.mxu0 %v1073
    %1215 = vmatprep.subr.mxu0 0.0
    %1216 = vmatpush1.msra.mxu0 0.0
    %1217 = vmatprep.subr.mxu0 0.0
    %1218 = vmatpush1.msra.mxu0 0.0
    %1219 = vmatprep.subr.mxu0 0.0
    %1220 = vmatpush1.msra.mxu0 0.0
    %1221 = vmatprep.subr.mxu0 0.0
    %1222 = vmatpush1.msra.mxu0 0.0
    %1223 = vmatprep.subr.mxu0 0.0
    %1224 = vmatpush1.msra.mxu0 0.0
    %1225 = vmatprep.subr.mxu0 0.0
    %1226 = vmatpush1.msra.mxu0 0.0
    %1227 = vmatprep.subr.mxu0 0.0
    %1228 = vmatpush1.msra.mxu0 0.0
    %1229 = vmatprep.subr.mxu0 0.0
    %1230 = vmatpush1.msra.mxu0 0.0
    %1231 = vmatprep.subr.mxu0 0.0
    %1232 = vmatpush1.msra.mxu0 0.0
    %1233 = vmatprep.subr.mxu0 0.0
    %1234 = vmatpush1.msra.mxu0 0.0
    %1235 = vmatprep.subr.mxu0 0.0
    %1236 = vmatpush1.msra.mxu0 0.0
    %1237 = vmatprep.subr.mxu0 0.0
    %1238 = vmatpush1.msra.mxu0 0.0
    %1239 = vmatprep.subr.mxu0 0.0
    %1240 = vmatpush1.msra.mxu0 0.0
    %1241 = vmatprep.subr.mxu0 0.0
    %1242 = vmatpush1.msra.mxu0 0.0
    %1243 = vmatprep.subr.mxu0 0.0
    %1244 = vmatpush1.msra.mxu0 0.0
    %1245 = vmatprep.subr.mxu0 0.0
    %1246 = vmatpush1.msra.mxu0 0.0
    %1247 = vmatprep.mubr.f32.mxu0 0.0
    %1248 = vmatmul.mubr.f32.gmra.mrb[0].mxu0 %v1182
    %v1249 = vpop.f32.mrb[0].mxu0
    %v1250 = vadd.f32 %v1074, %v1249
    %v1251 = vpop.f32.mrb[0].mxu0
    %1252 = vdwg.mxu0
    %v1253 = vmax.f32 %v1250, 0.0
    %1254 = vmatprep.subr.mxu0 0.0
    %1255 = vmatpush1.msra.mxu0 %v1075
    %1256 = vmatprep.subr.mxu0 0.0
    %1257 = vmatpush1.msra.mxu0 %v1076
    %1258 = vmatprep.subr.mxu0 0.0
    %1259 = vmatpush1.msra.mxu0 %v1077
    %1260 = vmatprep.subr.mxu0 0.0
    %1261 = vmatpush1.msra.mxu0 %v1078
    %1262 = vmatprep.subr.mxu0 0.0
    %1263 = vmatpush1.msra.mxu0 %v1079
    %1264 = vmatprep.subr.mxu0 0.0
    %1265 = vmatpush1.msra.mxu0 %v1080
    %1266 = vmatprep.subr.mxu0 0.0
    %1267 = vmatpush1.msra.mxu0 %v1081
    %1268 = vmatprep.subr.mxu0 0.0
    %1269 = vmatpush1.msra.mxu0 %v1082
    %1270 = vmatprep.subr.mxu0 0.0
    %1271 = vmatpush1.msra.mxu0 %v1083
    %1272 = vmatprep.subr.mxu0 0.0
    %1273 = vmatpush1.msra.mxu0 %v1084
    %1274 = vmatprep.subr.mxu0 0.0
    %1275 = vmatpush1.msra.mxu0 %v1085
    %1276 = vmatprep.subr.mxu0 0.0
    %1277 = vmatpush1.msra.mxu0 %v1086
    %1278 = vmatprep.subr.mxu0 0.0
    %1279 = vmatpush1.msra.mxu0 %v1087
    %1280 = vmatprep.subr.mxu0 0.0
    %1281 = vmatpush1.msra.mxu0 %v1088
    %1282 = vmatprep.subr.mxu0 0.0
    %1283 = vmatpush1.msra.mxu0 %v1089
    %1284 = vmatprep.subr.mxu0 0.0
    %1285 = vmatpush1.msra.mxu0 %v1090
    %1286 = vmatprep.subr.mxu0 0.0
    %1287 = vmatpush1.msra.mxu0 0.0
    %1288 = vmatprep.subr.mxu0 0.0
    %1289 = vmatpush1.msra.mxu0 0.0
    %1290 = vmatprep.subr.mxu0 0.0
    %1291 = vmatpush1.msra.mxu0 0.0
    %1292 = vmatprep.subr.mxu0 0.0
    %1293 = vmatpush1.msra.mxu0 0.0
    %1294 = vmatprep.subr.mxu0 0.0
    %1295 = vmatpush1.msra.mxu0 0.0
    %1296 = vmatprep.subr.mxu0 0.0
    %1297 = vmatpush1.msra.mxu0 0.0
    %1298 = vmatprep.subr.mxu0 0.0
    %1299 = vmatpush1.msra.mxu0 0.0
    %1300 = vmatprep.subr.mxu0 0.0
    %1301 = vmatpush1.msra.mxu0 0.0
    %1302 = vmatprep.subr.mxu0 0.0
    %1303 = vmatpush1.msra.mxu0 0.0
    %1304 = vmatprep.subr.mxu0 0.0
    %1305 = vmatpush1.msra.mxu0 0.0
    %1306 = vmatprep.subr.mxu0 0.0
    %1307 = vmatpush1.msra.mxu0 0.0
    %1308 = vmatprep.subr.mxu0 0.0
    %1309 = vmatpush1.msra.mxu0 0.0
    %1310 = vmatprep.subr.mxu0 0.0
    %1311 = vmatpush1.msra.mxu0 0.0
    %1312 = vmatprep.subr.mxu0 0.0
    %1313 = vmatpush1.msra.mxu0 0.0
    %1314 = vmatprep.subr.mxu0 0.0
    %1315 = vmatpush1.msra.mxu0 0.0
    %1316 = vmatprep.subr.mxu0 0.0
    %1317 = vmatpush1.msra.mxu0 0.0
    %1318 = vmatprep.mubr.f32.mxu0 0.0
    %1319 = vmatmul.mubr.f32.gmra.mrb[0].mxu0 %v1253
    %v1320 = vpop.f32.mrb[0].mxu0
    %v1321 = vadd.f32 %v1091, %v1320
    %v1322 = vpop.f32.mrb[0].mxu0
    %1323 = vdwg.mxu0
    %v1324 = vmax.f32 %v1321, 0.0
    %1325 = vmatprep.subr.mxu0 0.0
    %1326 = vmatpush1.msra.mxu0 %v1092
    %1327 = vmatprep.subr.mxu0 0.0
    %1328 = vmatpush1.msra.mxu0 %v1093
    %1329 = vmatprep.subr.mxu0 0.0
    %1330 = vmatpush1.msra.mxu0 %v1094
    %1331 = vmatprep.subr.mxu0 0.0
    %1332 = vmatpush1.msra.mxu0 %v1095
    %1333 = vmatprep.subr.mxu0 0.0
    %1334 = vmatpush1.msra.mxu0 %v1096
    %1335 = vmatprep.subr.mxu0 0.0
    %1336 = vmatpush1.msra.mxu0 %v1097
    %1337 = vmatprep.subr.mxu0 0.0
    %1338 = vmatpush1.msra.mxu0 %v1098
    %1339 = vmatprep.subr.mxu0 0.0
    %1340 = vmatpush1.msra.mxu0 %v1099
    %1341 = vmatprep.subr.mxu0 0.0
    %1342 = vmatpush1.msra.mxu0 %v1100
    %1343 = vmatprep.subr.mxu0 0.0
    %1344 = vmatpush1.msra.mxu0 %v1101
    %1345 = vmatprep.subr.mxu0 0.0
    %1346 = vmatpush1.msra.mxu0 %v1102
    %1347 = vmatprep.subr.mxu0 0.0
    %1348 = vmatpush1.msra.mxu0 %v1103
    %1349 = vmatprep.subr.mxu0 0.0
    %1350 = vmatpush1.msra.mxu0 %v1104
    %1351 = vmatprep.subr.mxu0 0.0
    %1352 = vmatpush1.msra.mxu0 %v1105
    %1353 = vmatprep.subr.mxu0 0.0
    %1354 = vmatpush1.msra.mxu0 %v1106
    %1355 = vmatprep.subr.mxu0 0.0
    %1356 = vmatpush1.msra.mxu0 %v1107
    %1357 = vmatprep.subr.mxu0 0.0
    %1358 = vmatpush1.msra.mxu0 0.0
    %1359 = vmatprep.subr.mxu0 0.0
    %1360 = vmatpush1.msra.mxu0 0.0
    %1361 = vmatprep.subr.mxu0 0.0
    %1362 = vmatpush1.msra.mxu0 0.0
    %1363 = vmatprep.subr.mxu0 0.0
    %1364 = vmatpush1.msra.mxu0 0.0
    %1365 = vmatprep.subr.mxu0 0.0
    %1366 = vmatpush1.msra.mxu0 0.0
    %1367 = vmatprep.subr.mxu0 0.0
    %1368 = vmatpush1.msra.mxu0 0.0
    %1369 = vmatprep.subr.mxu0 0.0
    %1370 = vmatpush1.msra.mxu0 0.0
    %1371 = vmatprep.subr.mxu0 0.0
    %1372 = vmatpush1.msra.mxu0 0.0
    %1373 = vmatprep.subr.mxu0 0.0
    %1374 = vmatpush1.msra.mxu0 0.0
    %1375 = vmatprep.subr.mxu0 0.0
    %1376 = vmatpush1.msra.mxu0 0.0
    %1377 = vmatprep.subr.mxu0 0.0
    %1378 = vmatpush1.msra.mxu0 0.0
    %1379 = vmatprep.subr.mxu0 0.0
    %1380 = vmatpush1.msra.mxu0 0.0
    %1381 = vmatprep.subr.mxu0 0.0
    %1382 = vmatpush1.msra.mxu0 0.0
    %1383 = vmatprep.subr.mxu0 0.0
    %1384 = vmatpush1.msra.mxu0 0.0
    %1385 = vmatprep.subr.mxu0 0.0
    %1386 = vmatpush1.msra.mxu0 0.0
    %1387 = vmatprep.subr.mxu0 0.0
    %1388 = vmatpush1.msra.mxu0 0.0
    %1389 = vmatprep.mubr.f32.mxu0 0.0
    %1390 = vmatmul.mubr.f32.gmra.mrb[0].mxu0 %v1324
    %v1391 = vpop.f32.mrb[0].mxu0
    %v1392 = vadd.f32 %v1108, %v1391
    %v1393 = vpop.f32.mrb[0].mxu0
    %1394 = vdwg.mxu0
    %1395 = vmax.xlane.f32.xlu0 %v1392
    %v1396 = vpop.xlane.xlu0 %1395
    %v1397 = vsub.f32 %v1392, %v1396
    %v1398 = vmul.f32 %v1397, 1.442695
    %v1399 = vpow.pop %v1398
    %1400 = vadd.xlane.f32.xlu0 %v1399
    %v1401 = vpop.xlane.xlu0 %1400
    %v1402 = vrcp.pop %v1401
    %v1403 = vmul.f32 %v1399, %v1402
    %1404 = vst [vmem:[%s2] sm:$0xff] %v1403
    // Predicated region
    $region14: #{bilstm_forward.1} parent=1 // pred_check
      _
    $region15: #{bilstm_forward.1} parent=1 // pred_check_branch
      %1406 = sbr.rel (0) target = $region17
    $region16: #{bilstm_forward.1} parent=1 // pred_region
      _
    $region17: #{bilstm_forward.1} parent=1 // pred_fallthru
      _
    // Predicated region
    $region18: #{bilstm_forward.1} parent=1 // pred_check
      _
    $region19: #{bilstm_forward.1} parent=1 // pred_check_branch
      %1408 = sbr.rel (0) target = $region21
    $region20: #{bilstm_forward.1} parent=1 // pred_region
      _
    $region21: #{bilstm_forward.1} parent=1 // pred_fallthru
      _
    %1409 = vsyncpa [#allocation3], 1

</llo_original>
